<compile_context>
chip_gen: v5e
topology: v5e:2x2
jax: 0.10.0
libtpu: 0.0.40
codegen_flags: <defaults>
</compile_context>

<pallas_src>
import jax
import jax.numpy as jnp
import numpy as np
from jax import lax
from jax.experimental import pallas as pl
from jax.experimental.pallas import tpu as pltpu

_LANE = 128  # lane width used for padding / the dense output slab


# ---------------- fused Pallas kernel ----------------

def _make_lenet_kernel(n_layers):
    """Kernel over refs: (x, W0, b0, W1, b1, ..., W_{L-1}, b_{L-1}, o).

    Layers 0..L-2: h = relu(bf16(h) @ W + b); layer L-1: sigmoid output.
    """

    def kernel(*refs):
        x_ref, o_ref = refs[0], refs[-1]
        h = x_ref[...].astype(jnp.float32)                  # (tile_b, K0)
        for li in range(n_layers):
            w_ref, b_ref = refs[1 + 2 * li], refs[2 + 2 * li]
            z = jnp.dot(h.astype(jnp.bfloat16), w_ref[...],
                        preferred_element_type=jnp.float32) + b_ref[...]
            if li < n_layers - 1:
                h = jnp.maximum(z, 0.0)
            else:
                # numerically robust sigmoid; reciprocal goes to the EUP slot
                ez = jnp.exp(-jnp.abs(z))                   # in (0, 1], no overflow
                s = pl.reciprocal(1.0 + ez, approx=True)
                o_ref[...] = jnp.where(z >= 0.0, s, 1.0 - s)

    return kernel


# ---------------- one-time weight preprocessing (host side, numpy) ----------------

def _conv_as_matrix_np(w, H, W):
    """Conv2d weights (Co,Ci,k,k) -> M: (Ci*H*W, Co*Ho*Wo) so that
    x_flat @ M == conv(x) flattened in torch NCHW order (VALID, stride 1)."""
    Co, Ci, k, _ = w.shape
    Ho, Wo = H - k + 1, W - k + 1
    co, ci, ky, kx, i, j = np.meshgrid(
        np.arange(Co), np.arange(Ci), np.arange(k), np.arange(k),
        np.arange(Ho), np.arange(Wo), indexing="ij")
    rows = (ci * H + (i + ky)) * W + (j + kx)
    cols = (co * Ho + i) * Wo + j
    m = np.zeros((Ci * H * W, Co * Ho * Wo), np.float32)
    m[rows.reshape(-1), cols.reshape(-1)] = w[co, ci, ky, kx].reshape(-1)
    return m, Ho, Wo


def _pool_as_matrix_np(C, Ho, Wo):
    """Constant matrix P: (C*Ho*Wo, C*Hp*Wp) implementing AvgPool2d(2, 2)."""
    Hp, Wp = (Ho - 2) // 2 + 1, (Wo - 2) // 2 + 1
    c, p, q, dy, dx = np.meshgrid(np.arange(C), np.arange(Hp), np.arange(Wp),
                                  np.arange(2), np.arange(2), indexing="ij")
    rows = (c * Ho + (2 * p + dy)) * Wo + (2 * q + dx)
    cols = (c * Hp + p) * Wp + q
    P = np.zeros((C * Ho * Wo, C * Hp * Wp), np.float32)
    P[rows.reshape(-1), cols.reshape(-1)] = 0.25
    return P, Hp, Wp


def fold_lenet_params(params, image_size, in_channels=1, lane=_LANE):
    """Fold conv -> Toeplitz matrices, pooling -> next layer's weights, zero-pad FC
    widths to `lane`, broadcast the final logit column, and cast weights to bf16.
    Run once per weight update; returns a flat tuple (W0, b0, W1, b1, ...)."""
    conv = [(np.asarray(w, np.float32), np.asarray(b, np.float32))
            for (w, b) in params["conv"]]
    fcs = [(np.asarray(w, np.float32), np.asarray(b, np.float32))
           for (w, b) in params["fc"]]

    # 1) raw GEMM chain with pooling matrices folded into the following layer
    layers = []
    h_cur, w_cur = image_size, image_size
    pending_pool = None
    for (wc, bc) in conv:
        Co = wc.shape[0]
        M, Ho, Wo = _conv_as_matrix_np(wc, h_cur, w_cur)
        if pending_pool is not None:
            M = pending_pool @ M                              # fold previous AvgPool
        cb = np.repeat(bc, Ho * Wo).reshape(1, -1)
        layers.append((M, cb))
        pending_pool, (h_cur, w_cur) = (lambda P, hw: (P, hw))(
            *[(p, (hp, wp)) for (p, hp, wp) in [_pool_as_matrix_np(Co, Ho, Wo)]][0])
    for (wf, bf) in fcs:
        W = wf
        if pending_pool is not None:
            W = pending_pool @ W                              # fold last AvgPool
            pending_pool = None
        layers.append((W, bf.reshape(1, -1)))

    # 2) lane-pad hidden widths, broadcast the final logit column, cast to bf16
    ops = []
    extra_rows = 0
    n_layers = len(layers)
    for li, (W, b) in enumerate(layers):
        if extra_rows:
            W = np.concatenate(
                [W, np.zeros((extra_rows, W.shape[1]), np.float32)], axis=0)
        last = (li == n_layers - 1)
        N = W.shape[1]
        if last and N == 1:
            W = np.repeat(W, lane, axis=1)                    # dense output store
            b = np.repeat(b, lane, axis=1)
            extra_rows = 0
        elif (not last) and N < lane:
            pad = lane - N
            W = np.concatenate([W, np.zeros((W.shape[0], pad), np.float32)], axis=1)
            b = np.concatenate([b, np.zeros((1, pad), np.float32)], axis=1)
            extra_rows = pad
        else:
            extra_rows = 0
        ops += [jnp.asarray(W, jnp.bfloat16), jnp.asarray(b, jnp.float32)]
    return tuple(ops)


# ---------------- forward ----------------

def _pick_tile_b(B):
    """Row tile: >=2 grid steps once B >= 16 (both v7x TCs), multiple of 8,
    capped at 512 so v5e/v6e stay within default scoped VMEM with big tiles."""
    if B <= 8:
        return B
    tile = pl.cdiv(pl.cdiv(B, 2), 8) * 8
    return min(tile, 512)


@jax.jit
def lenet_forward(x, ops):
    B = x.shape[0]
    x2d = x.reshape(B, -1).astype(jnp.float32)
    K0 = x2d.shape[1]
    n_layers = len(ops) // 2

    tile_b = _pick_tile_b(B)
    nb = pl.cdiv(B, tile_b)

    in_specs = [pl.BlockSpec((tile_b, K0), lambda i: (i, 0))]
    # weights: constant block index -> fetched once, stay VMEM-resident (~0.8 MiB bf16)
    in_specs += [pl.BlockSpec(op.shape, lambda i: (0, 0)) for op in ops]

    out = pl.pallas_call(
        _make_lenet_kernel(n_layers),
        out_shape=jax.ShapeDtypeStruct((B, _LANE), jnp.float32),
        grid=(nb,),
        in_specs=in_specs,
        out_specs=pl.BlockSpec((tile_b, _LANE), lambda i: (i, 0)),
        compiler_params=pltpu.CompilerParams(dimension_semantics=("parallel",)),
    )(x2d, *ops)
    return out[:, :1]                                         # (B, 1), matching the module


# ---------------- deterministic parameter init (PyTorch-style uniform) ----------------

def init_params(key, image_size, conv_filters, fc_layers):
    params = {"conv": [], "fc": []}
    in_ch, img = 1, image_size
    for (cout, k) in conv_filters:
        key, kw, kb = jax.random.split(key, 3)
        lim = 1.0 / np.sqrt(in_ch * k * k)
        w = jax.random.uniform(kw, (cout, in_ch, k, k), jnp.float32, -lim, lim)
        b = jax.random.uniform(kb, (cout,), jnp.float32, -lim, lim)
        params["conv"].append((w, b))
        in_ch = cout
        img = img - k + 1
        img = (img - 2) // 2 + 1
    in_size = in_ch * img * img
    for d in list(fc_layers) + [1]:
        key, kw, kb = jax.random.split(key, 3)
        lim = 1.0 / np.sqrt(in_size)
        w = jax.random.uniform(kw, (in_size, d), jnp.float32, -lim, lim)
        b = jax.random.uniform(kb, (d,), jnp.float32, -lim, lim)
        params["fc"].append((w, b))
        in_size = d
    return params


# ---------------- pure-JAX reference (validation only) ----------------

def reference_forward(x, params):
    out = x
    for (w, b) in params["conv"]:
        out = lax.conv_general_dilated(out, w, (1, 1), "VALID",
                                       dimension_numbers=("NCHW", "OIHW", "NCHW"))
        out = jax.nn.relu(out + b[None, :, None, None])
        B, C, H, W = out.shape
        Hp, Wp = (H - 2) // 2 + 1, (W - 2) // 2 + 1
        out = out[:, :, : 2 * Hp, : 2 * Wp].reshape(B, C, Hp, 2, Wp, 2).mean(axis=(3, 5))
    out = out.reshape(out.shape[0], -1)
    (w1, b1), (w2, b2), (w3, b3) = params["fc"]
    out = jax.nn.relu(out @ w1 + b1)
    out = jax.nn.relu(out @ w2 + b2)
    return jax.nn.sigmoid(out @ w3 + b3)


if __name__ == "__main__":
    key = jax.random.PRNGKey(0)
    kx, kp = jax.random.split(key)

    image_size = 16
    conv_filters = [(4, 3), (8, 3)]   # (out_channels, kernel_size)
    fc_layers = [32, 16]

    # LeNet.__init__ hard-codes in_channels = 1 -> input is (B, 1, H, W)
    x = jax.random.normal(kx, (2, 1, image_size, image_size), jnp.float32)
    params = init_params(kp, image_size, conv_filters, fc_layers)

    # One-time weight preprocessing (per weight update), outside the jitted forward.
    ops = fold_lenet_params(params, image_size)

    out = jax.block_until_ready(lenet_forward(x, ops))
    ref = jax.block_until_ready(reference_forward(x, params))

    assert out.shape == (2, 1), out.shape
    np.testing.assert_allclose(np.asarray(out), np.asarray(ref), atol=1e-2, rtol=1e-2)
    print("KERNEL_OK")
</pallas_src>

<mosaic_0001>
module attributes {stable_mosaic.version = 11 : i64} {
  func.func @kernel(%arg0: i32, %arg1: memref<2x256xf32, #tpu.memory_space<vmem>>, %arg2: memref<256x784xbf16, #tpu.memory_space<vmem>>, %arg3: memref<1x784xf32, #tpu.memory_space<vmem>>, %arg4: memref<784x200xbf16, #tpu.memory_space<vmem>>, %arg5: memref<1x200xf32, #tpu.memory_space<vmem>>, %arg6: memref<200x128xbf16, #tpu.memory_space<vmem>>, %arg7: memref<1x128xf32, #tpu.memory_space<vmem>>, %arg8: memref<128x128xbf16, #tpu.memory_space<vmem>>, %arg9: memref<1x128xf32, #tpu.memory_space<vmem>>, %arg10: memref<128x128xbf16, #tpu.memory_space<vmem>>, %arg11: memref<1x128xf32, #tpu.memory_space<vmem>>, %arg12: memref<2x128xf32, #tpu.memory_space<vmem>>) attributes {dimension_semantics = [#tpu.dimension_semantics<parallel>], iteration_bounds = array<i64: 1>, scalar_prefetch = 0 : i64, scratch_operands = 0 : i64, tpu.core_type = #tpu.core_type<tc>, window_params = [{transform_indices = @transform_0, window_bounds = array<i64: 2, 256>}, {pipeline_mode = #tpu.pipeline_mode<synchronous>, transform_indices = @transform_1, window_bounds = array<i64: 256, 784>}, {pipeline_mode = #tpu.pipeline_mode<synchronous>, transform_indices = @transform_2, window_bounds = array<i64: 1, 784>}, {pipeline_mode = #tpu.pipeline_mode<synchronous>, transform_indices = @transform_3, window_bounds = array<i64: 784, 200>}, {pipeline_mode = #tpu.pipeline_mode<synchronous>, transform_indices = @transform_4, window_bounds = array<i64: 1, 200>}, {pipeline_mode = #tpu.pipeline_mode<synchronous>, transform_indices = @transform_5, window_bounds = array<i64: 200, 128>}, {pipeline_mode = #tpu.pipeline_mode<synchronous>, transform_indices = @transform_6, window_bounds = array<i64: 1, 128>}, {pipeline_mode = #tpu.pipeline_mode<synchronous>, transform_indices = @transform_7, window_bounds = array<i64: 128, 128>}, {pipeline_mode = #tpu.pipeline_mode<synchronous>, transform_indices = @transform_8, window_bounds = array<i64: 1, 128>}, {pipeline_mode = #tpu.pipeline_mode<synchronous>, transform_indices = @transform_9, window_bounds = array<i64: 128, 128>}, {pipeline_mode = #tpu.pipeline_mode<synchronous>, transform_indices = @transform_10, window_bounds = array<i64: 1, 128>}, {transform_indices = @transform_11, window_bounds = array<i64: 2, 128>}]} {
    %c0 = arith.constant 0 : index
    %c0_0 = arith.constant 0 : index
    %0 = vector.load %arg1[%c0, %c0_0] : memref<2x256xf32, #tpu.memory_space<vmem>>, vector<2x256xf32>
    %1 = arith.truncf %0 : vector<2x256xf32> to vector<2x256xbf16>
    %c0_1 = arith.constant 0 : index
    %c0_2 = arith.constant 0 : index
    %2 = vector.load %arg2[%c0_1, %c0_2] : memref<256x784xbf16, #tpu.memory_space<vmem>>, vector<256x784xbf16>
    %cst = arith.constant dense<0.000000e+00> : vector<2x784xf32>
    %3 = tpu.matmul %1, %2, %cst {dimension_numbers = #tpu.dot_dimension_numbers<[1], [0], [0], [1], [0, 0, 1, 1], [], []>} : vector<2x256xbf16>, vector<256x784xbf16>, vector<2x784xf32> -> vector<2x784xf32>
    %c0_3 = arith.constant 0 : index
    %c0_4 = arith.constant 0 : index
    %4 = vector.load %arg3[%c0_3, %c0_4] : memref<1x784xf32, #tpu.memory_space<vmem>>, vector<1x784xf32>
    %5 = vector.broadcast %4 : vector<1x784xf32> to vector<2x784xf32>
    %6 = arith.addf %3, %5 : vector<2x784xf32>
    %cst_5 = arith.constant 0.000000e+00 : f32
    %7 = vector.broadcast %cst_5 : f32 to vector<2x784xf32>
    %8 = arith.maximumf %6, %7 : vector<2x784xf32>
    %9 = arith.truncf %8 : vector<2x784xf32> to vector<2x784xbf16>
    %c0_6 = arith.constant 0 : index
    %c0_7 = arith.constant 0 : index
    %10 = vector.load %arg4[%c0_6, %c0_7] : memref<784x200xbf16, #tpu.memory_space<vmem>>, vector<784x200xbf16>
    %cst_8 = arith.constant dense<0.000000e+00> : vector<2x200xf32>
    %11 = tpu.matmul %9, %10, %cst_8 {dimension_numbers = #tpu.dot_dimension_numbers<[1], [0], [0], [1], [0, 0, 1, 1], [], []>} : vector<2x784xbf16>, vector<784x200xbf16>, vector<2x200xf32> -> vector<2x200xf32>
    %c0_9 = arith.constant 0 : index
    %c0_10 = arith.constant 0 : index
    %12 = vector.load %arg5[%c0_9, %c0_10] : memref<1x200xf32, #tpu.memory_space<vmem>>, vector<1x200xf32>
    %13 = vector.broadcast %12 : vector<1x200xf32> to vector<2x200xf32>
    %14 = arith.addf %11, %13 : vector<2x200xf32>
    %cst_11 = arith.constant 0.000000e+00 : f32
    %15 = vector.broadcast %cst_11 : f32 to vector<2x200xf32>
    %16 = arith.maximumf %14, %15 : vector<2x200xf32>
    %17 = arith.truncf %16 : vector<2x200xf32> to vector<2x200xbf16>
    %c0_12 = arith.constant 0 : index
    %c0_13 = arith.constant 0 : index
    %18 = vector.load %arg6[%c0_12, %c0_13] : memref<200x128xbf16, #tpu.memory_space<vmem>>, vector<200x128xbf16>
    %cst_14 = arith.constant dense<0.000000e+00> : vector<2x128xf32>
    %19 = tpu.matmul %17, %18, %cst_14 {dimension_numbers = #tpu.dot_dimension_numbers<[1], [0], [0], [1], [0, 0, 1, 1], [], []>} : vector<2x200xbf16>, vector<200x128xbf16>, vector<2x128xf32> -> vector<2x128xf32>
    %c0_15 = arith.constant 0 : index
    %c0_16 = arith.constant 0 : index
    %20 = vector.load %arg7[%c0_15, %c0_16] : memref<1x128xf32, #tpu.memory_space<vmem>>, vector<1x128xf32>
    %21 = vector.broadcast %20 : vector<1x128xf32> to vector<2x128xf32>
    %22 = arith.addf %19, %21 : vector<2x128xf32>
    %cst_17 = arith.constant 0.000000e+00 : f32
    %23 = vector.broadcast %cst_17 : f32 to vector<2x128xf32>
    %24 = arith.maximumf %22, %23 : vector<2x128xf32>
    %25 = arith.truncf %24 : vector<2x128xf32> to vector<2x128xbf16>
    %c0_18 = arith.constant 0 : index
    %c0_19 = arith.constant 0 : index
    %26 = vector.load %arg8[%c0_18, %c0_19] : memref<128x128xbf16, #tpu.memory_space<vmem>>, vector<128x128xbf16>
    %cst_20 = arith.constant dense<0.000000e+00> : vector<2x128xf32>
    %27 = tpu.matmul %25, %26, %cst_20 {dimension_numbers = #tpu.dot_dimension_numbers<[1], [0], [0], [1], [0, 0, 1, 1], [], []>} : vector<2x128xbf16>, vector<128x128xbf16>, vector<2x128xf32> -> vector<2x128xf32>
    %c0_21 = arith.constant 0 : index
    %c0_22 = arith.constant 0 : index
    %28 = vector.load %arg9[%c0_21, %c0_22] : memref<1x128xf32, #tpu.memory_space<vmem>>, vector<1x128xf32>
    %29 = vector.broadcast %28 : vector<1x128xf32> to vector<2x128xf32>
    %30 = arith.addf %27, %29 : vector<2x128xf32>
    %cst_23 = arith.constant 0.000000e+00 : f32
    %31 = vector.broadcast %cst_23 : f32 to vector<2x128xf32>
    %32 = arith.maximumf %30, %31 : vector<2x128xf32>
    %33 = arith.truncf %32 : vector<2x128xf32> to vector<2x128xbf16>
    %c0_24 = arith.constant 0 : index
    %c0_25 = arith.constant 0 : index
    %34 = vector.load %arg10[%c0_24, %c0_25] : memref<128x128xbf16, #tpu.memory_space<vmem>>, vector<128x128xbf16>
    %cst_26 = arith.constant dense<0.000000e+00> : vector<2x128xf32>
    %35 = tpu.matmul %33, %34, %cst_26 {dimension_numbers = #tpu.dot_dimension_numbers<[1], [0], [0], [1], [0, 0, 1, 1], [], []>} : vector<2x128xbf16>, vector<128x128xbf16>, vector<2x128xf32> -> vector<2x128xf32>
    %c0_27 = arith.constant 0 : index
    %c0_28 = arith.constant 0 : index
    %36 = vector.load %arg11[%c0_27, %c0_28] : memref<1x128xf32, #tpu.memory_space<vmem>>, vector<1x128xf32>
    %37 = vector.broadcast %36 : vector<1x128xf32> to vector<2x128xf32>
    %38 = arith.addf %35, %37 : vector<2x128xf32>
    %39 = math.absf %38 : vector<2x128xf32>
    %cst_29 = arith.constant 0.000000e+00 : f32
    %40 = vector.broadcast %cst_29 : f32 to vector<2x128xf32>
    %41 = arith.subf %40, %39 : vector<2x128xf32>
    %42 = math.exp %41 : vector<2x128xf32>
    %cst_30 = arith.constant 1.000000e+00 : f32
    %43 = vector.broadcast %cst_30 : f32 to vector<2x128xf32>
    %44 = arith.addf %43, %42 : vector<2x128xf32>
    %45 = tpu.reciprocal %44 {approx = true} : vector<2x128xf32> -> vector<2x128xf32>
    %cst_31 = arith.constant 0.000000e+00 : f32
    %46 = vector.broadcast %cst_31 : f32 to vector<2x128xf32>
    %47 = arith.cmpf oge, %38, %46 : vector<2x128xf32>
    %cst_32 = arith.constant 1.000000e+00 : f32
    %48 = vector.broadcast %cst_32 : f32 to vector<2x128xf32>
    %49 = arith.subf %48, %45 : vector<2x128xf32>
    %50 = arith.select %47, %45, %49 : vector<2x128xi1>, vector<2x128xf32>
    %c0_33 = arith.constant 0 : index
    %c0_34 = arith.constant 0 : index
    %51 = vector.load %arg12[%c0_33, %c0_34] : memref<2x128xf32, #tpu.memory_space<vmem>>, vector<2x128xf32>
    tpu.vector_store %arg12[%c0_33, %c0_34], %50 {strides = array<i32>} : memref<2x128xf32, #tpu.memory_space<vmem>>, vector<2x128xf32>,
    return
  }
  func.func @transform_0(%arg0: i32) -> (i32, i32) {
    %c0_i32 = arith.constant 0 : i32
    %c0_i32_0 = arith.constant 0 : i32
    return %arg0, %c0_i32 : i32, i32
  }
  func.func @transform_1(%arg0: i32) -> (i32, i32) {
    %c0_i32 = arith.constant 0 : i32
    %c0_i32_0 = arith.constant 0 : i32
    %c0_i32_1 = arith.constant 0 : i32
    return %c0_i32, %c0_i32_0 : i32, i32
  }
  func.func @transform_2(%arg0: i32) -> (i32, i32) {
    %c0_i32 = arith.constant 0 : i32
    %c0_i32_0 = arith.constant 0 : i32
    %c0_i32_1 = arith.constant 0 : i32
    return %c0_i32, %c0_i32_0 : i32, i32
  }
  func.func @transform_3(%arg0: i32) -> (i32, i32) {
    %c0_i32 = arith.constant 0 : i32
    %c0_i32_0 = arith.constant 0 : i32
    %c0_i32_1 = arith.constant 0 : i32
    return %c0_i32, %c0_i32_0 : i32, i32
  }
  func.func @transform_4(%arg0: i32) -> (i32, i32) {
    %c0_i32 = arith.constant 0 : i32
    %c0_i32_0 = arith.constant 0 : i32
    %c0_i32_1 = arith.constant 0 : i32
    return %c0_i32, %c0_i32_0 : i32, i32
  }
  func.func @transform_5(%arg0: i32) -> (i32, i32) {
    %c0_i32 = arith.constant 0 : i32
    %c0_i32_0 = arith.constant 0 : i32
    %c0_i32_1 = arith.constant 0 : i32
    return %c0_i32, %c0_i32_0 : i32, i32
  }
  func.func @transform_6(%arg0: i32) -> (i32, i32) {
    %c0_i32 = arith.constant 0 : i32
    %c0_i32_0 = arith.constant 0 : i32
    %c0_i32_1 = arith.constant 0 : i32
    return %c0_i32, %c0_i32_0 : i32, i32
  }
  func.func @transform_7(%arg0: i32) -> (i32, i32) {
    %c0_i32 = arith.constant 0 : i32
    %c0_i32_0 = arith.constant 0 : i32
    %c0_i32_1 = arith.constant 0 : i32
    return %c0_i32, %c0_i32_0 : i32, i32
  }
  func.func @transform_8(%arg0: i32) -> (i32, i32) {
    %c0_i32 = arith.constant 0 : i32
    %c0_i32_0 = arith.constant 0 : i32
    %c0_i32_1 = arith.constant 0 : i32
    return %c0_i32, %c0_i32_0 : i32, i32
  }
  func.func @transform_9(%arg0: i32) -> (i32, i32) {
    %c0_i32 = arith.constant 0 : i32
    %c0_i32_0 = arith.constant 0 : i32
    %c0_i32_1 = arith.constant 0 : i32
    return %c0_i32, %c0_i32_0 : i32, i32
  }
  func.func @transform_10(%arg0: i32) -> (i32, i32) {
    %c0_i32 = arith.constant 0 : i32
    %c0_i32_0 = arith.constant 0 : i32
    %c0_i32_1 = arith.constant 0 : i32
    return %c0_i32, %c0_i32_0 : i32, i32
  }
  func.func @transform_11(%arg0: i32) -> (i32, i32) {
    %c0_i32 = arith.constant 0 : i32
    %c0_i32_0 = arith.constant 0 : i32
    return %arg0, %c0_i32 : i32, i32
  }
}

</mosaic_0001>

<llo_original>
// kernel: lenet_forward.1
$region0: #{lenet_forward.1}
  #allocation0 [shape = 'u32[]', space=smem, size = 0x4, offset = 0x4, fixed_abs, tag = 'smem constant byte address 0x4 - core index']
  #allocation1 [shape = 'u32[72,128]{1,0:T(1,128)}', space=vmem, size = 0x9000, scoped, tag = 'internal scratch']
  %s0 = inlined_call_operand.vmem [shape: f32[2,256], index: 0, kind: input, shape index: {}]
  %s1 = inlined_call_operand.vmem [shape: bf16[256,784], index: 1, kind: input, shape index: {}]
  %s2 = inlined_call_operand.vmem [shape: f32[1,784], index: 2, kind: input, shape index: {}]
  %s3 = inlined_call_operand.vmem [shape: bf16[784,200], index: 3, kind: input, shape index: {}]
  %s4 = inlined_call_operand.vmem [shape: f32[1,200], index: 4, kind: input, shape index: {}]
  %s5 = inlined_call_operand.vmem [shape: bf16[200,128], index: 5, kind: input, shape index: {}]
  %s6 = inlined_call_operand.vmem [shape: f32[1,128], index: 6, kind: input, shape index: {}]
  %s7 = inlined_call_operand.vmem [shape: bf16[128,128], index: 7, kind: input, shape index: {}]
  %s8 = inlined_call_operand.vmem [shape: f32[1,128], index: 8, kind: input, shape index: {}]
  %s9 = inlined_call_operand.vmem [shape: bf16[128,128], index: 9, kind: input, shape index: {}]
  %s10 = inlined_call_operand.vmem [shape: f32[1,128], index: 10, kind: input, shape index: {}]
  %s11 = inlined_call_operand.vmem [shape: f32[2,128], index: 11, kind: output, shape index: {}]
  %s12 = sld [smem:[#allocation0]]
  $region54: #{lenet_forward.1} parent=0
    _
  %s14 = ssub.s32 1, %s12
  %s15 = scalar_select 0, %s14, %s12
  // Predicated region
  $region2: #{lenet_forward.1} parent=0 // pred_check
    _
  $region3: #{lenet_forward.1} parent=0 // pred_check_branch
    %17 = sbr.rel (0) target = $region5
  $region4: #{lenet_forward.1} parent=0 // pred_region
    _
  $region5: #{lenet_forward.1} parent=0 // pred_fallthru
    _
  // Predicated region
  $region6: #{lenet_forward.1} parent=0 // pred_check
    _
  $region7: #{lenet_forward.1} parent=0 // pred_check_branch
    %19 = sbr.rel (0) target = $region9
  $region8: #{lenet_forward.1} parent=0 // pred_region
    _
  $region9: #{lenet_forward.1} parent=0 // pred_fallthru
    _
  // Predicated region
  $region10: #{lenet_forward.1} parent=0 // pred_check
    _
  $region11: #{lenet_forward.1} parent=0 // pred_check_branch
    %21 = sbr.rel (0) target = $region13
  $region12: #{lenet_forward.1} parent=0 // pred_region
    _
  $region13: #{lenet_forward.1} parent=0 // pred_fallthru
    _
  // Predicated region
  $region14: #{lenet_forward.1} parent=0 // pred_check
    _
  $region15: #{lenet_forward.1} parent=0 // pred_check_branch
    %23 = sbr.rel (0) target = $region17
  $region16: #{lenet_forward.1} parent=0 // pred_region
    _
  $region17: #{lenet_forward.1} parent=0 // pred_fallthru
    _
  // Predicated region
  $region18: #{lenet_forward.1} parent=0 // pred_check
    _
  $region19: #{lenet_forward.1} parent=0 // pred_check_branch
    %25 = sbr.rel (0) target = $region21
  $region20: #{lenet_forward.1} parent=0 // pred_region
    _
  $region21: #{lenet_forward.1} parent=0 // pred_fallthru
    _
  // Predicated region
  $region22: #{lenet_forward.1} parent=0 // pred_check
    _
  $region23: #{lenet_forward.1} parent=0 // pred_check_branch
    %27 = sbr.rel (0) target = $region25
  $region24: #{lenet_forward.1} parent=0 // pred_region
    _
  $region25: #{lenet_forward.1} parent=0 // pred_fallthru
    _
  // Predicated region
  $region26: #{lenet_forward.1} parent=0 // pred_check
    _
  $region27: #{lenet_forward.1} parent=0 // pred_check_branch
    %29 = sbr.rel (0) target = $region29
  $region28: #{lenet_forward.1} parent=0 // pred_region
    _
  $region29: #{lenet_forward.1} parent=0 // pred_fallthru
    _
  // Predicated region
  $region30: #{lenet_forward.1} parent=0 // pred_check
    _
  $region31: #{lenet_forward.1} parent=0 // pred_check_branch
    %31 = sbr.rel (0) target = $region33
  $region32: #{lenet_forward.1} parent=0 // pred_region
    _
  $region33: #{lenet_forward.1} parent=0 // pred_fallthru
    _
  // Predicated region
  $region34: #{lenet_forward.1} parent=0 // pred_check
    _
  $region35: #{lenet_forward.1} parent=0 // pred_check_branch
    %33 = sbr.rel (0) target = $region37
  $region36: #{lenet_forward.1} parent=0 // pred_region
    _
  $region37: #{lenet_forward.1} parent=0 // pred_fallthru
    _
  // Predicated region
  $region38: #{lenet_forward.1} parent=0 // pred_check
    _
  $region39: #{lenet_forward.1} parent=0 // pred_check_branch
    %35 = sbr.rel (0) target = $region41
  $region40: #{lenet_forward.1} parent=0 // pred_region
    _
  $region41: #{lenet_forward.1} parent=0 // pred_fallthru
    _
  // Predicated region
  $region42: #{lenet_forward.1} parent=0 // pred_check
    _
  $region43: #{lenet_forward.1} parent=0 // pred_check_branch
    %37 = sbr.rel (0) target = $region45
  $region44: #{lenet_forward.1} parent=0 // pred_region
    _
  $region45: #{lenet_forward.1} parent=0 // pred_fallthru
    _
  %v39 = vld [vmem:[%s0] sm:$0xf]
  %41 = vst [vmem:[#allocation1] ss:$4 sm:$0xff] %v39
  %v42 = vld.sshfl [vmem:[#allocation1] sm:$0xff pattern:$0x73625140]
  %v43 = vld.sshfl [vmem:[#allocation1 + $0x8] sm:$0xff pattern:$0x73625140]
  %v46 = vpack.c.bf16 %v42, %v42
  %v47 = vpack.c.bf16 %v43, %v43
  %v48 = vld [vmem:[%s1] sm:$0xff]
  %v49 = vld [vmem:[%s1 + $0x8] sm:$0xff]
  %v50 = vld [vmem:[%s1 + $0x10] sm:$0xff]
  %v51 = vld [vmem:[%s1 + $0x18] sm:$0xf]
  %v52 = vld [vmem:[%s1 + $0x1c] sm:$0xff]
  %v53 = vld [vmem:[%s1 + $0x24] sm:$0xff]
  %v54 = vld [vmem:[%s1 + $0x2c] sm:$0xff]
  %v55 = vld [vmem:[%s1 + $0x34] sm:$0xf]
  %v56 = vld [vmem:[%s1 + $0x38] sm:$0xff]
  %v57 = vld [vmem:[%s1 + $0x40] sm:$0xff]
  %v58 = vld [vmem:[%s1 + $0x48] sm:$0xff]
  %v59 = vld [vmem:[%s1 + $0x50] sm:$0xf]
  %v60 = vld [vmem:[%s1 + $0x54] sm:$0xff]
  %v61 = vld [vmem:[%s1 + $0x5c] sm:$0xff]
  %v62 = vld [vmem:[%s1 + $0x64] sm:$0xff]
  %v63 = vld [vmem:[%s1 + $0x6c] sm:$0xf]
  %v64 = vld [vmem:[%s1 + $0x70] sm:$0xff]
  %v65 = vld [vmem:[%s1 + $0x78] sm:$0xff]
  %v66 = vld [vmem:[%s1 + $0x80] sm:$0xff]
  %v67 = vld [vmem:[%s1 + $0x88] sm:$0xf]
  %v68 = vld [vmem:[%s1 + $0x8c] sm:$0xff]
  %v69 = vld [vmem:[%s1 + $0x94] sm:$0xff]
  %v70 = vld [vmem:[%s1 + $0x9c] sm:$0xff]
  %v71 = vld [vmem:[%s1 + $0xa4] sm:$0xf]
  %v72 = vld [vmem:[%s1 + $0xa8] sm:$0xff]
  %v73 = vld [vmem:[%s1 + $0xb0] sm:$0xff]
  %v74 = vld [vmem:[%s1 + $0xb8] sm:$0xff]
  %v75 = vld [vmem:[%s1 + $0xc0] sm:$0xf]
  %v76 = vld [vmem:[%s1 + $0xc4] sm:$0xff]
  %v77 = vld [vmem:[%s1 + $0xcc] sm:$0xff]
  %v78 = vld [vmem:[%s1 + $0xd4] sm:$0xff]
  %v79 = vld [vmem:[%s1 + $0xdc] sm:$0xf]
  %v80 = vld [vmem:[%s1 + $0xe0] sm:$0xff]
  %v81 = vld [vmem:[%s1 + $0xe8] sm:$0xff]
  %v82 = vld [vmem:[%s1 + $0xf0] sm:$0xff]
  %v83 = vld [vmem:[%s1 + $0xf8] sm:$0xf]
  %v84 = vld [vmem:[%s1 + $0xfc] sm:$0xff]
  %v85 = vld [vmem:[%s1 + $0x104] sm:$0xff]
  %v86 = vld [vmem:[%s1 + $0x10c] sm:$0xff]
  %v87 = vld [vmem:[%s1 + $0x114] sm:$0xf]
  %v88 = vld [vmem:[%s1 + $0x118] sm:$0xff]
  %v89 = vld [vmem:[%s1 + $0x120] sm:$0xff]
  %v90 = vld [vmem:[%s1 + $0x128] sm:$0xff]
  %v91 = vld [vmem:[%s1 + $0x130] sm:$0xf]
  %v92 = vld [vmem:[%s1 + $0x134] sm:$0xff]
  %v93 = vld [vmem:[%s1 + $0x13c] sm:$0xff]
  %v94 = vld [vmem:[%s1 + $0x144] sm:$0xff]
  %v95 = vld [vmem:[%s1 + $0x14c] sm:$0xf]
  %v96 = vld [vmem:[%s1 + $0x150] sm:$0xff]
  %v97 = vld [vmem:[%s1 + $0x158] sm:$0xff]
  %v98 = vld [vmem:[%s1 + $0x160] sm:$0xff]
  %v99 = vld [vmem:[%s1 + $0x168] sm:$0xf]
  %v100 = vld [vmem:[%s1 + $0x16c] sm:$0xff]
  %v101 = vld [vmem:[%s1 + $0x174] sm:$0xff]
  %v102 = vld [vmem:[%s1 + $0x17c] sm:$0xff]
  %v103 = vld [vmem:[%s1 + $0x184] sm:$0xf]
  %v104 = vld [vmem:[%s1 + $0x188] sm:$0xff]
  %v105 = vld [vmem:[%s1 + $0x190] sm:$0xff]
  %v106 = vld [vmem:[%s1 + $0x198] sm:$0xff]
  %v107 = vld [vmem:[%s1 + $0x1a0] sm:$0xf]
  %v108 = vld [vmem:[%s1 + $0x1a4] sm:$0xff]
  %v109 = vld [vmem:[%s1 + $0x1ac] sm:$0xff]
  %v110 = vld [vmem:[%s1 + $0x1b4] sm:$0xff]
  %v111 = vld [vmem:[%s1 + $0x1bc] sm:$0xf]
  %v112 = vld [vmem:[%s1 + $0x1c0] sm:$0xff]
  %v113 = vld [vmem:[%s1 + $0x1c8] sm:$0xff]
  %v114 = vld [vmem:[%s1 + $0x1d0] sm:$0xff]
  %v115 = vld [vmem:[%s1 + $0x1d8] sm:$0xf]
  %v116 = vld [vmem:[%s1 + $0x1dc] sm:$0xff]
  %v117 = vld [vmem:[%s1 + $0x1e4] sm:$0xff]
  %v118 = vld [vmem:[%s1 + $0x1ec] sm:$0xff]
  %v119 = vld [vmem:[%s1 + $0x1f4] sm:$0xf]
  %v120 = vld [vmem:[%s1 + $0x1f8] sm:$0xff]
  %v121 = vld [vmem:[%s1 + $0x200] sm:$0xff]
  %v122 = vld [vmem:[%s1 + $0x208] sm:$0xff]
  %v123 = vld [vmem:[%s1 + $0x210] sm:$0xf]
  %v124 = vld [vmem:[%s1 + $0x214] sm:$0xff]
  %v125 = vld [vmem:[%s1 + $0x21c] sm:$0xff]
  %v126 = vld [vmem:[%s1 + $0x224] sm:$0xff]
  %v127 = vld [vmem:[%s1 + $0x22c] sm:$0xf]
  %v128 = vld [vmem:[%s1 + $0x230] sm:$0xff]
  %v129 = vld [vmem:[%s1 + $0x238] sm:$0xff]
  %v130 = vld [vmem:[%s1 + $0x240] sm:$0xff]
  %v131 = vld [vmem:[%s1 + $0x248] sm:$0xf]
  %v132 = vld [vmem:[%s1 + $0x24c] sm:$0xff]
  %v133 = vld [vmem:[%s1 + $0x254] sm:$0xff]
  %v134 = vld [vmem:[%s1 + $0x25c] sm:$0xff]
  %v135 = vld [vmem:[%s1 + $0x264] sm:$0xf]
  %v136 = vld [vmem:[%s1 + $0x268] sm:$0xff]
  %v137 = vld [vmem:[%s1 + $0x270] sm:$0xff]
  %v138 = vld [vmem:[%s1 + $0x278] sm:$0xff]
  %v139 = vld [vmem:[%s1 + $0x280] sm:$0xf]
  %v140 = vld [vmem:[%s1 + $0x284] sm:$0xff]
  %v141 = vld [vmem:[%s1 + $0x28c] sm:$0xff]
  %v142 = vld [vmem:[%s1 + $0x294] sm:$0xff]
  %v143 = vld [vmem:[%s1 + $0x29c] sm:$0xf]
  %v144 = vld [vmem:[%s1 + $0x2a0] sm:$0xff]
  %v145 = vld [vmem:[%s1 + $0x2a8] sm:$0xff]
  %v146 = vld [vmem:[%s1 + $0x2b0] sm:$0xff]
  %v147 = vld [vmem:[%s1 + $0x2b8] sm:$0xf]
  %v148 = vld [vmem:[%s1 + $0x2bc] sm:$0xff]
  %v149 = vld [vmem:[%s1 + $0x2c4] sm:$0xff]
  %v150 = vld [vmem:[%s1 + $0x2cc] sm:$0xff]
  %v151 = vld [vmem:[%s1 + $0x2d4] sm:$0xf]
  %v152 = vld [vmem:[%s1 + $0x2d8] sm:$0xff]
  %v153 = vld [vmem:[%s1 + $0x2e0] sm:$0xff]
  %v154 = vld [vmem:[%s1 + $0x2e8] sm:$0xff]
  %v155 = vld [vmem:[%s1 + $0x2f0] sm:$0xf]
  %v156 = vld [vmem:[%s1 + $0x2f4] sm:$0xff]
  %v157 = vld [vmem:[%s1 + $0x2fc] sm:$0xff]
  %v158 = vld [vmem:[%s1 + $0x304] sm:$0xff]
  %v159 = vld [vmem:[%s1 + $0x30c] sm:$0xf]
  %v160 = vld [vmem:[%s1 + $0x310] sm:$0xff]
  %v161 = vld [vmem:[%s1 + $0x318] sm:$0xff]
  %v162 = vld [vmem:[%s1 + $0x320] sm:$0xff]
  %v163 = vld [vmem:[%s1 + $0x328] sm:$0xf]
  %v164 = vld [vmem:[%s1 + $0x32c] sm:$0xff]
  %v165 = vld [vmem:[%s1 + $0x334] sm:$0xff]
  %v166 = vld [vmem:[%s1 + $0x33c] sm:$0xff]
  %v167 = vld [vmem:[%s1 + $0x344] sm:$0xf]
  %v168 = vld [vmem:[%s1 + $0x348] sm:$0xff]
  %v169 = vld [vmem:[%s1 + $0x350] sm:$0xff]
  %v170 = vld [vmem:[%s1 + $0x358] sm:$0xff]
  %v171 = vld [vmem:[%s1 + $0x360] sm:$0xf]
  %v172 = vld [vmem:[%s1 + $0x364] sm:$0xff]
  %v173 = vld [vmem:[%s1 + $0x36c] sm:$0xff]
  %v174 = vld [vmem:[%s1 + $0x374] sm:$0xff]
  %v175 = vld [vmem:[%s1 + $0x37c] sm:$0xf]
  %v176 = vld [vmem:[%s2] sm:$0x7f]
  %v178 = vperm.slane %v176, 0
  %v179 = vperm.slane %v176, 1
  %v180 = vperm.slane %v176, 2
  %v181 = vperm.slane %v176, 3
  %v182 = vperm.slane %v176, 4
  %v183 = vperm.slane %v176, 5
  %v184 = vperm.slane %v176, 6
  %v320 = vunpack.c.l.b16 %v48
  %v321 = vunpack.c.h.b16 %v48
  %v322 = vunpack.c.l.b16 %v49
  %v323 = vunpack.c.h.b16 %v49
  %v324 = vunpack.c.l.b16 %v50
  %v325 = vunpack.c.h.b16 %v50
  %v326 = vunpack.c.l.b16 %v51
  %v327 = vunpack.c.l.b16 %v52
  %v328 = vunpack.c.h.b16 %v52
  %v329 = vunpack.c.l.b16 %v53
  %v330 = vunpack.c.h.b16 %v53
  %v331 = vunpack.c.l.b16 %v54
  %v332 = vunpack.c.h.b16 %v54
  %v333 = vunpack.c.l.b16 %v55
  %v334 = vunpack.c.l.b16 %v56
  %v335 = vunpack.c.h.b16 %v56
  %v336 = vunpack.c.l.b16 %v57
  %v337 = vunpack.c.h.b16 %v57
  %v338 = vunpack.c.l.b16 %v58
  %v339 = vunpack.c.h.b16 %v58
  %v340 = vunpack.c.l.b16 %v59
  %v341 = vunpack.c.l.b16 %v60
  %v342 = vunpack.c.h.b16 %v60
  %v343 = vunpack.c.l.b16 %v61
  %v344 = vunpack.c.h.b16 %v61
  %v345 = vunpack.c.l.b16 %v62
  %v346 = vunpack.c.h.b16 %v62
  %v347 = vunpack.c.l.b16 %v63
  %v348 = vunpack.c.l.b16 %v64
  %v349 = vunpack.c.h.b16 %v64
  %v350 = vunpack.c.l.b16 %v65
  %v351 = vunpack.c.h.b16 %v65
  %v352 = vunpack.c.l.b16 %v66
  %v353 = vunpack.c.h.b16 %v66
  %v354 = vunpack.c.l.b16 %v67
  %v355 = vunpack.c.l.b16 %v68
  %v356 = vunpack.c.h.b16 %v68
  %v357 = vunpack.c.l.b16 %v69
  %v358 = vunpack.c.h.b16 %v69
  %v359 = vunpack.c.l.b16 %v70
  %v360 = vunpack.c.h.b16 %v70
  %v361 = vunpack.c.l.b16 %v71
  %v362 = vunpack.c.l.b16 %v72
  %v363 = vunpack.c.h.b16 %v72
  %v364 = vunpack.c.l.b16 %v73
  %v365 = vunpack.c.h.b16 %v73
  %v366 = vunpack.c.l.b16 %v74
  %v367 = vunpack.c.h.b16 %v74
  %v368 = vunpack.c.l.b16 %v75
  %v369 = vunpack.c.l.b16 %v76
  %v370 = vunpack.c.h.b16 %v76
  %v371 = vunpack.c.l.b16 %v77
  %v372 = vunpack.c.h.b16 %v77
  %v373 = vunpack.c.l.b16 %v78
  %v374 = vunpack.c.h.b16 %v78
  %v375 = vunpack.c.l.b16 %v79
  %v376 = vunpack.c.l.b16 %v80
  %v377 = vunpack.c.h.b16 %v80
  %v378 = vunpack.c.l.b16 %v81
  %v379 = vunpack.c.h.b16 %v81
  %v380 = vunpack.c.l.b16 %v82
  %v381 = vunpack.c.h.b16 %v82
  %v382 = vunpack.c.l.b16 %v83
  %v383 = vunpack.c.l.b16 %v84
  %v384 = vunpack.c.h.b16 %v84
  %v385 = vunpack.c.l.b16 %v85
  %v386 = vunpack.c.h.b16 %v85
  %v387 = vunpack.c.l.b16 %v86
  %v388 = vunpack.c.h.b16 %v86
  %v389 = vunpack.c.l.b16 %v87
  %v390 = vunpack.c.l.b16 %v88
  %v391 = vunpack.c.h.b16 %v88
  %v392 = vunpack.c.l.b16 %v89
  %v393 = vunpack.c.h.b16 %v89
  %v394 = vunpack.c.l.b16 %v90
  %v395 = vunpack.c.h.b16 %v90
  %v396 = vunpack.c.l.b16 %v91
  %v397 = vunpack.c.l.b16 %v92
  %v398 = vunpack.c.h.b16 %v92
  %v399 = vunpack.c.l.b16 %v93
  %v400 = vunpack.c.h.b16 %v93
  %v401 = vunpack.c.l.b16 %v94
  %v402 = vunpack.c.h.b16 %v94
  %v403 = vunpack.c.l.b16 %v95
  %v404 = vunpack.c.l.b16 %v96
  %v405 = vunpack.c.h.b16 %v96
  %v406 = vunpack.c.l.b16 %v97
  %v407 = vunpack.c.h.b16 %v97
  %v408 = vunpack.c.l.b16 %v98
  %v409 = vunpack.c.h.b16 %v98
  %v410 = vunpack.c.l.b16 %v99
  %v411 = vunpack.c.l.b16 %v100
  %v412 = vunpack.c.h.b16 %v100
  %v413 = vunpack.c.l.b16 %v101
  %v414 = vunpack.c.h.b16 %v101
  %v415 = vunpack.c.l.b16 %v102
  %v416 = vunpack.c.h.b16 %v102
  %v417 = vunpack.c.l.b16 %v103
  %v418 = vunpack.c.l.b16 %v104
  %v419 = vunpack.c.h.b16 %v104
  %v420 = vunpack.c.l.b16 %v105
  %v421 = vunpack.c.h.b16 %v105
  %v422 = vunpack.c.l.b16 %v106
  %v423 = vunpack.c.h.b16 %v106
  %v424 = vunpack.c.l.b16 %v107
  %v425 = vunpack.c.l.b16 %v108
  %v426 = vunpack.c.h.b16 %v108
  %v427 = vunpack.c.l.b16 %v109
  %v428 = vunpack.c.h.b16 %v109
  %v429 = vunpack.c.l.b16 %v110
  %v430 = vunpack.c.h.b16 %v110
  %v431 = vunpack.c.l.b16 %v111
  %v432 = vunpack.c.l.b16 %v112
  %v433 = vunpack.c.h.b16 %v112
  %v434 = vunpack.c.l.b16 %v113
  %v435 = vunpack.c.h.b16 %v113
  %v436 = vunpack.c.l.b16 %v114
  %v437 = vunpack.c.h.b16 %v114
  %v438 = vunpack.c.l.b16 %v115
  %v439 = vunpack.c.l.b16 %v116
  %v440 = vunpack.c.h.b16 %v116
  %v441 = vunpack.c.l.b16 %v117
  %v442 = vunpack.c.h.b16 %v117
  %v443 = vunpack.c.l.b16 %v118
  %v444 = vunpack.c.h.b16 %v118
  %v445 = vunpack.c.l.b16 %v119
  %v446 = vunpack.c.l.b16 %v120
  %v447 = vunpack.c.h.b16 %v120
  %v448 = vunpack.c.l.b16 %v121
  %v449 = vunpack.c.h.b16 %v121
  %v450 = vunpack.c.l.b16 %v122
  %v451 = vunpack.c.h.b16 %v122
  %v452 = vunpack.c.l.b16 %v123
  %v453 = vunpack.c.l.b16 %v124
  %v454 = vunpack.c.h.b16 %v124
  %v455 = vunpack.c.l.b16 %v125
  %v456 = vunpack.c.h.b16 %v125
  %v457 = vunpack.c.l.b16 %v126
  %v458 = vunpack.c.h.b16 %v126
  %v459 = vunpack.c.l.b16 %v127
  %v460 = vunpack.c.l.b16 %v128
  %v461 = vunpack.c.h.b16 %v128
  %v462 = vunpack.c.l.b16 %v129
  %v463 = vunpack.c.h.b16 %v129
  %v464 = vunpack.c.l.b16 %v130
  %v465 = vunpack.c.h.b16 %v130
  %v466 = vunpack.c.l.b16 %v131
  %v467 = vunpack.c.l.b16 %v132
  %v468 = vunpack.c.h.b16 %v132
  %v469 = vunpack.c.l.b16 %v133
  %v470 = vunpack.c.h.b16 %v133
  %v471 = vunpack.c.l.b16 %v134
  %v472 = vunpack.c.h.b16 %v134
  %v473 = vunpack.c.l.b16 %v135
  %v474 = vunpack.c.l.b16 %v136
  %v475 = vunpack.c.h.b16 %v136
  %v476 = vunpack.c.l.b16 %v137
  %v477 = vunpack.c.h.b16 %v137
  %v478 = vunpack.c.l.b16 %v138
  %v479 = vunpack.c.h.b16 %v138
  %v480 = vunpack.c.l.b16 %v139
  %v481 = vunpack.c.l.b16 %v140
  %v482 = vunpack.c.h.b16 %v140
  %v483 = vunpack.c.l.b16 %v141
  %v484 = vunpack.c.h.b16 %v141
  %v485 = vunpack.c.l.b16 %v142
  %v486 = vunpack.c.h.b16 %v142
  %v487 = vunpack.c.l.b16 %v143
  %v488 = vunpack.c.l.b16 %v144
  %v489 = vunpack.c.h.b16 %v144
  %v490 = vunpack.c.l.b16 %v145
  %v491 = vunpack.c.h.b16 %v145
  %v492 = vunpack.c.l.b16 %v146
  %v493 = vunpack.c.h.b16 %v146
  %v494 = vunpack.c.l.b16 %v147
  %v495 = vunpack.c.l.b16 %v148
  %v496 = vunpack.c.h.b16 %v148
  %v497 = vunpack.c.l.b16 %v149
  %v498 = vunpack.c.h.b16 %v149
  %v499 = vunpack.c.l.b16 %v150
  %v500 = vunpack.c.h.b16 %v150
  %v501 = vunpack.c.l.b16 %v151
  %v502 = vunpack.c.l.b16 %v152
  %v503 = vunpack.c.h.b16 %v152
  %v504 = vunpack.c.l.b16 %v153
  %v505 = vunpack.c.h.b16 %v153
  %v506 = vunpack.c.l.b16 %v154
  %v507 = vunpack.c.h.b16 %v154
  %v508 = vunpack.c.l.b16 %v155
  %v509 = vunpack.c.l.b16 %v156
  %v510 = vunpack.c.h.b16 %v156
  %v511 = vunpack.c.l.b16 %v157
  %v512 = vunpack.c.h.b16 %v157
  %v513 = vunpack.c.l.b16 %v158
  %v514 = vunpack.c.h.b16 %v158
  %v515 = vunpack.c.l.b16 %v159
  %v516 = vunpack.c.l.b16 %v160
  %v517 = vunpack.c.h.b16 %v160
  %v518 = vunpack.c.l.b16 %v161
  %v519 = vunpack.c.h.b16 %v161
  %v520 = vunpack.c.l.b16 %v162
  %v521 = vunpack.c.h.b16 %v162
  %v522 = vunpack.c.l.b16 %v163
  %v523 = vunpack.c.l.b16 %v164
  %v524 = vunpack.c.h.b16 %v164
  %v525 = vunpack.c.l.b16 %v165
  %v526 = vunpack.c.h.b16 %v165
  %v527 = vunpack.c.l.b16 %v166
  %v528 = vunpack.c.h.b16 %v166
  %v529 = vunpack.c.l.b16 %v167
  %v530 = vunpack.c.l.b16 %v168
  %v531 = vunpack.c.h.b16 %v168
  %v532 = vunpack.c.l.b16 %v169
  %v533 = vunpack.c.h.b16 %v169
  %v534 = vunpack.c.l.b16 %v170
  %v535 = vunpack.c.h.b16 %v170
  %v536 = vunpack.c.l.b16 %v171
  %v537 = vunpack.c.l.b16 %v172
  %v538 = vunpack.c.h.b16 %v172
  %v539 = vunpack.c.l.b16 %v173
  %v540 = vunpack.c.h.b16 %v173
  %v541 = vunpack.c.l.b16 %v174
  %v542 = vunpack.c.h.b16 %v174
  %v543 = vunpack.c.l.b16 %v175
  %v544 = vpack.c.b16 %v327, %v320
  %v545 = vpack.c.b16 %v328, %v321
  %v546 = vpack.c.b16 %v329, %v322
  %v547 = vpack.c.b16 %v330, %v323
  %v548 = vpack.c.b16 %v331, %v324
  %v549 = vpack.c.b16 %v332, %v325
  %v550 = vpack.c.b16 %v333, %v326
  %v551 = vpack.c.b16 %v341, %v334
  %v552 = vpack.c.b16 %v342, %v335
  %v553 = vpack.c.b16 %v343, %v336
  %v554 = vpack.c.b16 %v344, %v337
  %v555 = vpack.c.b16 %v345, %v338
  %v556 = vpack.c.b16 %v346, %v339
  %v557 = vpack.c.b16 %v347, %v340
  %v558 = vpack.c.b16 %v355, %v348
  %v559 = vpack.c.b16 %v356, %v349
  %v560 = vpack.c.b16 %v357, %v350
  %v561 = vpack.c.b16 %v358, %v351
  %v562 = vpack.c.b16 %v359, %v352
  %v563 = vpack.c.b16 %v360, %v353
  %v564 = vpack.c.b16 %v361, %v354
  %v565 = vpack.c.b16 %v369, %v362
  %v566 = vpack.c.b16 %v370, %v363
  %v567 = vpack.c.b16 %v371, %v364
  %v568 = vpack.c.b16 %v372, %v365
  %v569 = vpack.c.b16 %v373, %v366
  %v570 = vpack.c.b16 %v374, %v367
  %v571 = vpack.c.b16 %v375, %v368
  %v572 = vpack.c.b16 %v383, %v376
  %v573 = vpack.c.b16 %v384, %v377
  %v574 = vpack.c.b16 %v385, %v378
  %v575 = vpack.c.b16 %v386, %v379
  %v576 = vpack.c.b16 %v387, %v380
  %v577 = vpack.c.b16 %v388, %v381
  %v578 = vpack.c.b16 %v389, %v382
  %v579 = vpack.c.b16 %v397, %v390
  %v580 = vpack.c.b16 %v398, %v391
  %v581 = vpack.c.b16 %v399, %v392
  %v582 = vpack.c.b16 %v400, %v393
  %v583 = vpack.c.b16 %v401, %v394
  %v584 = vpack.c.b16 %v402, %v395
  %v585 = vpack.c.b16 %v403, %v396
  %v586 = vpack.c.b16 %v411, %v404
  %v587 = vpack.c.b16 %v412, %v405
  %v588 = vpack.c.b16 %v413, %v406
  %v589 = vpack.c.b16 %v414, %v407
  %v590 = vpack.c.b16 %v415, %v408
  %v591 = vpack.c.b16 %v416, %v409
  %v592 = vpack.c.b16 %v417, %v410
  %v593 = vpack.c.b16 %v425, %v418
  %v594 = vpack.c.b16 %v426, %v419
  %v595 = vpack.c.b16 %v427, %v420
  %v596 = vpack.c.b16 %v428, %v421
  %v597 = vpack.c.b16 %v429, %v422
  %v598 = vpack.c.b16 %v430, %v423
  %v599 = vpack.c.b16 %v431, %v424
  %v600 = vpack.c.b16 %v439, %v432
  %v601 = vpack.c.b16 %v440, %v433
  %v602 = vpack.c.b16 %v441, %v434
  %v603 = vpack.c.b16 %v442, %v435
  %v604 = vpack.c.b16 %v443, %v436
  %v605 = vpack.c.b16 %v444, %v437
  %v606 = vpack.c.b16 %v445, %v438
  %v607 = vpack.c.b16 %v453, %v446
  %v608 = vpack.c.b16 %v454, %v447
  %v609 = vpack.c.b16 %v455, %v448
  %v610 = vpack.c.b16 %v456, %v449
  %v611 = vpack.c.b16 %v457, %v450
  %v612 = vpack.c.b16 %v458, %v451
  %v613 = vpack.c.b16 %v459, %v452
  %v614 = vpack.c.b16 %v467, %v460
  %v615 = vpack.c.b16 %v468, %v461
  %v616 = vpack.c.b16 %v469, %v462
  %v617 = vpack.c.b16 %v470, %v463
  %v618 = vpack.c.b16 %v471, %v464
  %v619 = vpack.c.b16 %v472, %v465
  %v620 = vpack.c.b16 %v473, %v466
  %v621 = vpack.c.b16 %v481, %v474
  %v622 = vpack.c.b16 %v482, %v475
  %v623 = vpack.c.b16 %v483, %v476
  %v624 = vpack.c.b16 %v484, %v477
  %v625 = vpack.c.b16 %v485, %v478
  %v626 = vpack.c.b16 %v486, %v479
  %v627 = vpack.c.b16 %v487, %v480
  %v628 = vpack.c.b16 %v495, %v488
  %v629 = vpack.c.b16 %v496, %v489
  %v630 = vpack.c.b16 %v497, %v490
  %v631 = vpack.c.b16 %v498, %v491
  %v632 = vpack.c.b16 %v499, %v492
  %v633 = vpack.c.b16 %v500, %v493
  %v634 = vpack.c.b16 %v501, %v494
  %v635 = vpack.c.b16 %v509, %v502
  %v636 = vpack.c.b16 %v510, %v503
  %v637 = vpack.c.b16 %v511, %v504
  %v638 = vpack.c.b16 %v512, %v505
  %v639 = vpack.c.b16 %v513, %v506
  %v640 = vpack.c.b16 %v514, %v507
  %v641 = vpack.c.b16 %v515, %v508
  %v642 = vpack.c.b16 %v523, %v516
  %v643 = vpack.c.b16 %v524, %v517
  %v644 = vpack.c.b16 %v525, %v518
  %v645 = vpack.c.b16 %v526, %v519
  %v646 = vpack.c.b16 %v527, %v520
  %v647 = vpack.c.b16 %v528, %v521
  %v648 = vpack.c.b16 %v529, %v522
  %v649 = vpack.c.b16 %v537, %v530
  %v650 = vpack.c.b16 %v538, %v531
  %v651 = vpack.c.b16 %v539, %v532
  %v652 = vpack.c.b16 %v540, %v533
  %v653 = vpack.c.b16 %v541, %v534
  %v654 = vpack.c.b16 %v542, %v535
  %v655 = vpack.c.b16 %v543, %v536
  %768 = vmatpush.bf16.msra.mxu0 %v593
  %769 = vmatpush.bf16.msra.mxu0 %v586
  %770 = vmatpush.bf16.msra.mxu0 %v579
  %771 = vmatpush.bf16.msra.mxu0 %v572
  %772 = vmatpush.bf16.msra.mxu0 %v565
  %773 = vmatpush.bf16.msra.mxu0 %v558
  %774 = vmatpush.bf16.msra.mxu0 %v551
  %775 = vmatpush.bf16.msra.mxu0 %v544
  %776 = vmatmul.bf16.gmra.mxu0 %v46
  %v777 = vpop.f32.mrf.mxu0
  %v778 = vadd.f32 %v178, %v777
  %v779 = vpop.f32.mrf.mxu0
  %780 = vdwg.mxu0
  %781 = vmatpush.bf16.msra.mxu0 %v649
  %782 = vmatpush.bf16.msra.mxu0 %v642
  %783 = vmatpush.bf16.msra.mxu0 %v635
  %784 = vmatpush.bf16.msra.mxu0 %v628
  %785 = vmatpush.bf16.msra.mxu0 %v621
  %786 = vmatpush.bf16.msra.mxu0 %v614
  %787 = vmatpush.bf16.msra.mxu0 %v607
  %788 = vmatpush.bf16.msra.mxu0 %v600
  %789 = vmatmul.bf16.gmra.mxu0 %v47
  %v790 = vpop.f32.mrf.mxu0
  %v791 = vadd.f32 %v778, %v790
  %v792 = vpop.f32.mrf.mxu0
  %793 = vdwg.mxu0
  %794 = vmatpush.bf16.msra.mxu0 %v594
  %795 = vmatpush.bf16.msra.mxu0 %v587
  %796 = vmatpush.bf16.msra.mxu0 %v580
  %797 = vmatpush.bf16.msra.mxu0 %v573
  %798 = vmatpush.bf16.msra.mxu0 %v566
  %799 = vmatpush.bf16.msra.mxu0 %v559
  %800 = vmatpush.bf16.msra.mxu0 %v552
  %801 = vmatpush.bf16.msra.mxu0 %v545
  %802 = vmatmul.bf16.gmra.mxu0 %v46
  %v803 = vpop.f32.mrf.mxu0
  %v804 = vadd.f32 %v179, %v803
  %v805 = vpop.f32.mrf.mxu0
  %806 = vdwg.mxu0
  %807 = vmatpush.bf16.msra.mxu0 %v650
  %808 = vmatpush.bf16.msra.mxu0 %v643
  %809 = vmatpush.bf16.msra.mxu0 %v636
  %810 = vmatpush.bf16.msra.mxu0 %v629
  %811 = vmatpush.bf16.msra.mxu0 %v622
  %812 = vmatpush.bf16.msra.mxu0 %v615
  %813 = vmatpush.bf16.msra.mxu0 %v608
  %814 = vmatpush.bf16.msra.mxu0 %v601
  %815 = vmatmul.bf16.gmra.mxu0 %v47
  %v816 = vpop.f32.mrf.mxu0
  %v817 = vadd.f32 %v804, %v816
  %v818 = vpop.f32.mrf.mxu0
  %819 = vdwg.mxu0
  %820 = vmatpush.bf16.msra.mxu0 %v595
  %821 = vmatpush.bf16.msra.mxu0 %v588
  %822 = vmatpush.bf16.msra.mxu0 %v581
  %823 = vmatpush.bf16.msra.mxu0 %v574
  %824 = vmatpush.bf16.msra.mxu0 %v567
  %825 = vmatpush.bf16.msra.mxu0 %v560
  %826 = vmatpush.bf16.msra.mxu0 %v553
  %827 = vmatpush.bf16.msra.mxu0 %v546
  %828 = vmatmul.bf16.gmra.mxu0 %v46
  %v829 = vpop.f32.mrf.mxu0
  %v830 = vadd.f32 %v180, %v829
  %v831 = vpop.f32.mrf.mxu0
  %832 = vdwg.mxu0
  %833 = vmatpush.bf16.msra.mxu0 %v651
  %834 = vmatpush.bf16.msra.mxu0 %v644
  %835 = vmatpush.bf16.msra.mxu0 %v637
  %836 = vmatpush.bf16.msra.mxu0 %v630
  %837 = vmatpush.bf16.msra.mxu0 %v623
  %838 = vmatpush.bf16.msra.mxu0 %v616
  %839 = vmatpush.bf16.msra.mxu0 %v609
  %840 = vmatpush.bf16.msra.mxu0 %v602
  %841 = vmatmul.bf16.gmra.mxu0 %v47
  %v842 = vpop.f32.mrf.mxu0
  %v843 = vadd.f32 %v830, %v842
  %v844 = vpop.f32.mrf.mxu0
  %845 = vdwg.mxu0
  %846 = vmatpush.bf16.msra.mxu0 %v596
  %847 = vmatpush.bf16.msra.mxu0 %v589
  %848 = vmatpush.bf16.msra.mxu0 %v582
  %849 = vmatpush.bf16.msra.mxu0 %v575
  %850 = vmatpush.bf16.msra.mxu0 %v568
  %851 = vmatpush.bf16.msra.mxu0 %v561
  %852 = vmatpush.bf16.msra.mxu0 %v554
  %853 = vmatpush.bf16.msra.mxu0 %v547
  %854 = vmatmul.bf16.gmra.mxu0 %v46
  %v855 = vpop.f32.mrf.mxu0
  %v856 = vadd.f32 %v181, %v855
  %v857 = vpop.f32.mrf.mxu0
  %858 = vdwg.mxu0
  %859 = vmatpush.bf16.msra.mxu0 %v652
  %860 = vmatpush.bf16.msra.mxu0 %v645
  %861 = vmatpush.bf16.msra.mxu0 %v638
  %862 = vmatpush.bf16.msra.mxu0 %v631
  %863 = vmatpush.bf16.msra.mxu0 %v624
  %864 = vmatpush.bf16.msra.mxu0 %v617
  %865 = vmatpush.bf16.msra.mxu0 %v610
  %866 = vmatpush.bf16.msra.mxu0 %v603
  %867 = vmatmul.bf16.gmra.mxu0 %v47
  %v868 = vpop.f32.mrf.mxu0
  %v869 = vadd.f32 %v856, %v868
  %v870 = vpop.f32.mrf.mxu0
  %871 = vdwg.mxu0
  %872 = vmatpush.bf16.msra.mxu0 %v597
  %873 = vmatpush.bf16.msra.mxu0 %v590
  %874 = vmatpush.bf16.msra.mxu0 %v583
  %875 = vmatpush.bf16.msra.mxu0 %v576
  %876 = vmatpush.bf16.msra.mxu0 %v569
  %877 = vmatpush.bf16.msra.mxu0 %v562
  %878 = vmatpush.bf16.msra.mxu0 %v555
  %879 = vmatpush.bf16.msra.mxu0 %v548
  %880 = vmatmul.bf16.gmra.mxu0 %v46
  %v881 = vpop.f32.mrf.mxu0
  %v882 = vadd.f32 %v182, %v881
  %v883 = vpop.f32.mrf.mxu0
  %884 = vdwg.mxu0
  %885 = vmatpush.bf16.msra.mxu0 %v653
  %886 = vmatpush.bf16.msra.mxu0 %v646
  %887 = vmatpush.bf16.msra.mxu0 %v639
  %888 = vmatpush.bf16.msra.mxu0 %v632
  %889 = vmatpush.bf16.msra.mxu0 %v625
  %890 = vmatpush.bf16.msra.mxu0 %v618
  %891 = vmatpush.bf16.msra.mxu0 %v611
  %892 = vmatpush.bf16.msra.mxu0 %v604
  %893 = vmatmul.bf16.gmra.mxu0 %v47
  %v894 = vpop.f32.mrf.mxu0
  %v895 = vadd.f32 %v882, %v894
  %v896 = vpop.f32.mrf.mxu0
  %897 = vdwg.mxu0
  %898 = vmatpush.bf16.msra.mxu0 %v598
  %899 = vmatpush.bf16.msra.mxu0 %v591
  %900 = vmatpush.bf16.msra.mxu0 %v584
  %901 = vmatpush.bf16.msra.mxu0 %v577
  %902 = vmatpush.bf16.msra.mxu0 %v570
  %903 = vmatpush.bf16.msra.mxu0 %v563
  %904 = vmatpush.bf16.msra.mxu0 %v556
  %905 = vmatpush.bf16.msra.mxu0 %v549
  %906 = vmatmul.bf16.gmra.mxu0 %v46
  %v907 = vpop.f32.mrf.mxu0
  %v908 = vadd.f32 %v183, %v907
  %v909 = vpop.f32.mrf.mxu0
  %910 = vdwg.mxu0
  %911 = vmatpush.bf16.msra.mxu0 %v654
  %912 = vmatpush.bf16.msra.mxu0 %v647
  %913 = vmatpush.bf16.msra.mxu0 %v640
  %914 = vmatpush.bf16.msra.mxu0 %v633
  %915 = vmatpush.bf16.msra.mxu0 %v626
  %916 = vmatpush.bf16.msra.mxu0 %v619
  %917 = vmatpush.bf16.msra.mxu0 %v612
  %918 = vmatpush.bf16.msra.mxu0 %v605
  %919 = vmatmul.bf16.gmra.mxu0 %v47
  %v920 = vpop.f32.mrf.mxu0
  %v921 = vadd.f32 %v908, %v920
  %v922 = vpop.f32.mrf.mxu0
  %923 = vdwg.mxu0
  %924 = vmatpush.bf16.msra.mxu0 %v599
  %925 = vmatpush.bf16.msra.mxu0 %v592
  %926 = vmatpush.bf16.msra.mxu0 %v585
  %927 = vmatpush.bf16.msra.mxu0 %v578
  %928 = vmatpush.bf16.msra.mxu0 %v571
  %929 = vmatpush.bf16.msra.mxu0 %v564
  %930 = vmatpush.bf16.msra.mxu0 %v557
  %931 = vmatpush.bf16.msra.mxu0 %v550
  %932 = vmatmul.bf16.gmra.mxu0 %v46
  %v933 = vpop.f32.mrf.mxu0
  %v934 = vadd.f32 %v184, %v933
  %v935 = vpop.f32.mrf.mxu0
  %936 = vdwg.mxu0
  %937 = vmatpush.bf16.msra.mxu0 %v655
  %938 = vmatpush.bf16.msra.mxu0 %v648
  %939 = vmatpush.bf16.msra.mxu0 %v641
  %940 = vmatpush.bf16.msra.mxu0 %v634
  %941 = vmatpush.bf16.msra.mxu0 %v627
  %942 = vmatpush.bf16.msra.mxu0 %v620
  %943 = vmatpush.bf16.msra.mxu0 %v613
  %944 = vmatpush.bf16.msra.mxu0 %v606
  %945 = vmatmul.bf16.gmra.mxu0 %v47
  %v946 = vpop.f32.mrf.mxu0
  %v947 = vadd.f32 %v934, %v946
  %v948 = vpop.f32.mrf.mxu0
  %949 = vdwg.mxu0
  %v950 = vmax.f32 %v791, 0.0
  %v951 = vmax.f32 %v817, 0.0
  %v952 = vmax.f32 %v843, 0.0
  %v953 = vmax.f32 %v869, 0.0
  %v954 = vmax.f32 %v895, 0.0
  %v955 = vmax.f32 %v921, 0.0
  %v956 = vmax.f32 %v947, 0.0
  %v957 = vpack.c.bf16 %v950, %v950
  %v958 = vpack.c.bf16 %v951, %v951
  %v959 = vpack.c.bf16 %v952, %v952
  %v960 = vpack.c.bf16 %v953, %v953
  %v961 = vpack.c.bf16 %v954, %v954
  %v962 = vpack.c.bf16 %v955, %v955
  %v963 = vpack.c.bf16 %v956, %v956
  %v964 = vld [vmem:[%s3] sm:$0xff]
  %v965 = vld [vmem:[%s3 + $0x8] sm:$0xff]
  %v966 = vld [vmem:[%s3 + $0x10] sm:$0xff]
  %v967 = vld [vmem:[%s3 + $0x18] sm:$0xff]
  %v968 = vld [vmem:[%s3 + $0x20] sm:$0xff]
  %v969 = vld [vmem:[%s3 + $0x28] sm:$0xff]
  %v970 = vld [vmem:[%s3 + $0x30] sm:$0xff]
  %v971 = vld [vmem:[%s3 + $0x38] sm:$0xff]
  %v972 = vld [vmem:[%s3 + $0x40] sm:$0xff]
  %v973 = vld [vmem:[%s3 + $0x48] sm:$0xff]
  %v974 = vld [vmem:[%s3 + $0x50] sm:$0xff]
  %v975 = vld [vmem:[%s3 + $0x58] sm:$0xff]
  %v976 = vld [vmem:[%s3 + $0x60] sm:$0xff]
  %v977 = vld [vmem:[%s3 + $0x68] sm:$0xff]
  %v978 = vld [vmem:[%s3 + $0x70] sm:$0xff]
  %v979 = vld [vmem:[%s3 + $0x78] sm:$0xff]
  %v980 = vld [vmem:[%s3 + $0x80] sm:$0xff]
  %v981 = vld [vmem:[%s3 + $0x88] sm:$0xff]
  %v982 = vld [vmem:[%s3 + $0x90] sm:$0xff]
  %v983 = vld [vmem:[%s3 + $0x98] sm:$0xff]
  %v984 = vld [vmem:[%s3 + $0xa0] sm:$0xff]
  %v985 = vld [vmem:[%s3 + $0xa8] sm:$0xff]
  %v986 = vld [vmem:[%s3 + $0xb0] sm:$0xff]
  %v987 = vld [vmem:[%s3 + $0xb8] sm:$0xff]
  %v988 = vld [vmem:[%s3 + $0xc0] sm:$0xff]
  %v989 = vld [vmem:[%s3 + $0xc8] sm:$0xff]
  %v990 = vld [vmem:[%s3 + $0xd0] sm:$0xff]
  %v991 = vld [vmem:[%s3 + $0xd8] sm:$0xff]
  %v992 = vld [vmem:[%s3 + $0xe0] sm:$0xff]
  %v993 = vld [vmem:[%s3 + $0xe8] sm:$0xff]
  %v994 = vld [vmem:[%s3 + $0xf0] sm:$0xff]
  %v995 = vld [vmem:[%s3 + $0xf8] sm:$0xff]
  %v996 = vld [vmem:[%s3 + $0x100] sm:$0xff]
  %v997 = vld [vmem:[%s3 + $0x108] sm:$0xff]
  %v998 = vld [vmem:[%s3 + $0x110] sm:$0xff]
  %v999 = vld [vmem:[%s3 + $0x118] sm:$0xff]
  %v1000 = vld [vmem:[%s3 + $0x120] sm:$0xff]
  %v1001 = vld [vmem:[%s3 + $0x128] sm:$0xff]
  %v1002 = vld [vmem:[%s3 + $0x130] sm:$0xff]
  %v1003 = vld [vmem:[%s3 + $0x138] sm:$0xff]
  %v1004 = vld [vmem:[%s3 + $0x140] sm:$0xff]
  %v1005 = vld [vmem:[%s3 + $0x148] sm:$0xff]
  %v1006 = vld [vmem:[%s3 + $0x150] sm:$0xff]
  %v1007 = vld [vmem:[%s3 + $0x158] sm:$0xff]
  %v1008 = vld [vmem:[%s3 + $0x160] sm:$0xff]
  %v1009 = vld [vmem:[%s3 + $0x168] sm:$0xff]
  %v1010 = vld [vmem:[%s3 + $0x170] sm:$0xff]
  %v1011 = vld [vmem:[%s3 + $0x178] sm:$0xff]
  %v1012 = vld [vmem:[%s3 + $0x180] sm:$0xff]
  %v1013 = vld [vmem:[%s3 + $0x188] sm:$0xff]
  %v1014 = vld [vmem:[%s3 + $0x190] sm:$0xff]
  %v1015 = vld [vmem:[%s3 + $0x198] sm:$0xff]
  %v1016 = vld [vmem:[%s3 + $0x1a0] sm:$0xff]
  %v1017 = vld [vmem:[%s3 + $0x1a8] sm:$0xff]
  %v1018 = vld [vmem:[%s3 + $0x1b0] sm:$0xff]
  %v1019 = vld [vmem:[%s3 + $0x1b8] sm:$0xff]
  %v1020 = vld [vmem:[%s3 + $0x1c0] sm:$0xff]
  %v1021 = vld [vmem:[%s3 + $0x1c8] sm:$0xff]
  %v1022 = vld [vmem:[%s3 + $0x1d0] sm:$0xff]
  %v1023 = vld [vmem:[%s3 + $0x1d8] sm:$0xff]
  %v1024 = vld [vmem:[%s3 + $0x1e0] sm:$0xff]
  %v1025 = vld [vmem:[%s3 + $0x1e8] sm:$0xff]
  %v1026 = vld [vmem:[%s3 + $0x1f0] sm:$0xff]
  %v1027 = vld [vmem:[%s3 + $0x1f8] sm:$0xff]
  %v1028 = vld [vmem:[%s3 + $0x200] sm:$0xff]
  %v1029 = vld [vmem:[%s3 + $0x208] sm:$0xff]
  %v1030 = vld [vmem:[%s3 + $0x210] sm:$0xff]
  %v1031 = vld [vmem:[%s3 + $0x218] sm:$0xff]
  %v1032 = vld [vmem:[%s3 + $0x220] sm:$0xff]
  %v1033 = vld [vmem:[%s3 + $0x228] sm:$0xff]
  %v1034 = vld [vmem:[%s3 + $0x230] sm:$0xff]
  %v1035 = vld [vmem:[%s3 + $0x238] sm:$0xff]
  %v1036 = vld [vmem:[%s3 + $0x240] sm:$0xff]
  %v1037 = vld [vmem:[%s3 + $0x248] sm:$0xff]
  %v1038 = vld [vmem:[%s3 + $0x250] sm:$0xff]
  %v1039 = vld [vmem:[%s3 + $0x258] sm:$0xff]
  %v1040 = vld [vmem:[%s3 + $0x260] sm:$0xff]
  %v1041 = vld [vmem:[%s3 + $0x268] sm:$0xff]
  %v1042 = vld [vmem:[%s3 + $0x270] sm:$0xff]
  %v1043 = vld [vmem:[%s3 + $0x278] sm:$0xff]
  %v1044 = vld [vmem:[%s3 + $0x280] sm:$0xff]
  %v1045 = vld [vmem:[%s3 + $0x288] sm:$0xff]
  %v1046 = vld [vmem:[%s3 + $0x290] sm:$0xff]
  %v1047 = vld [vmem:[%s3 + $0x298] sm:$0xff]
  %v1048 = vld [vmem:[%s3 + $0x2a0] sm:$0xff]
  %v1049 = vld [vmem:[%s3 + $0x2a8] sm:$0xff]
  %v1050 = vld [vmem:[%s3 + $0x2b0] sm:$0xff]
  %v1051 = vld [vmem:[%s3 + $0x2b8] sm:$0xff]
  %v1052 = vld [vmem:[%s3 + $0x2c0] sm:$0xff]
  %v1053 = vld [vmem:[%s3 + $0x2c8] sm:$0xff]
  %v1054 = vld [vmem:[%s3 + $0x2d0] sm:$0xff]
  %v1055 = vld [vmem:[%s3 + $0x2d8] sm:$0xff]
  %v1056 = vld [vmem:[%s3 + $0x2e0] sm:$0xff]
  %v1057 = vld [vmem:[%s3 + $0x2e8] sm:$0xff]
  %v1058 = vld [vmem:[%s3 + $0x2f0] sm:$0xff]
  %v1059 = vld [vmem:[%s3 + $0x2f8] sm:$0xff]
  %v1060 = vld [vmem:[%s3 + $0x300] sm:$0xff]
  %v1061 = vld [vmem:[%s3 + $0x308] sm:$0xff]
  %v1062 = vld [vmem:[%s4] sm:$0x3]
  %v1064 = vperm.slane %v1062, 0
  %v1065 = vperm.slane %v1062, 1
  %v1166 = vunpack.c.l.b16 %v964
  %v1167 = vunpack.c.h.b16 %v964
  %v1168 = vunpack.c.l.b16 %v965
  %v1169 = vunpack.c.h.b16 %v965
  %v1170 = vunpack.c.l.b16 %v966
  %v1171 = vunpack.c.h.b16 %v966
  %v1172 = vunpack.c.l.b16 %v967
  %v1173 = vunpack.c.h.b16 %v967
  %v1174 = vunpack.c.l.b16 %v968
  %v1175 = vunpack.c.h.b16 %v968
  %v1176 = vunpack.c.l.b16 %v969
  %v1177 = vunpack.c.h.b16 %v969
  %v1178 = vunpack.c.l.b16 %v970
  %v1179 = vunpack.c.h.b16 %v970
  %v1180 = vunpack.c.l.b16 %v971
  %v1181 = vunpack.c.h.b16 %v971
  %v1182 = vunpack.c.l.b16 %v972
  %v1183 = vunpack.c.h.b16 %v972
  %v1184 = vunpack.c.l.b16 %v973
  %v1185 = vunpack.c.h.b16 %v973
  %v1186 = vunpack.c.l.b16 %v974
  %v1187 = vunpack.c.h.b16 %v974
  %v1188 = vunpack.c.l.b16 %v975
  %v1189 = vunpack.c.h.b16 %v975
  %v1190 = vunpack.c.l.b16 %v976
  %v1191 = vunpack.c.h.b16 %v976
  %v1192 = vunpack.c.l.b16 %v977
  %v1193 = vunpack.c.h.b16 %v977
  %v1194 = vunpack.c.l.b16 %v978
  %v1195 = vunpack.c.h.b16 %v978
  %v1196 = vunpack.c.l.b16 %v979
  %v1197 = vunpack.c.h.b16 %v979
  %v1198 = vunpack.c.l.b16 %v980
  %v1199 = vunpack.c.h.b16 %v980
  %v1200 = vunpack.c.l.b16 %v981
  %v1201 = vunpack.c.h.b16 %v981
  %v1202 = vunpack.c.l.b16 %v982
  %v1203 = vunpack.c.h.b16 %v982
  %v1204 = vunpack.c.l.b16 %v983
  %v1205 = vunpack.c.h.b16 %v983
  %v1206 = vunpack.c.l.b16 %v984
  %v1207 = vunpack.c.h.b16 %v984
  %v1208 = vunpack.c.l.b16 %v985
  %v1209 = vunpack.c.h.b16 %v985
  %v1210 = vunpack.c.l.b16 %v986
  %v1211 = vunpack.c.h.b16 %v986
  %v1212 = vunpack.c.l.b16 %v987
  %v1213 = vunpack.c.h.b16 %v987
  %v1214 = vunpack.c.l.b16 %v988
  %v1215 = vunpack.c.h.b16 %v988
  %v1216 = vunpack.c.l.b16 %v989
  %v1217 = vunpack.c.h.b16 %v989
  %v1218 = vunpack.c.l.b16 %v990
  %v1219 = vunpack.c.h.b16 %v990
  %v1220 = vunpack.c.l.b16 %v991
  %v1221 = vunpack.c.h.b16 %v991
  %v1222 = vunpack.c.l.b16 %v992
  %v1223 = vunpack.c.h.b16 %v992
  %v1224 = vunpack.c.l.b16 %v993
  %v1225 = vunpack.c.h.b16 %v993
  %v1226 = vunpack.c.l.b16 %v994
  %v1227 = vunpack.c.h.b16 %v994
  %v1228 = vunpack.c.l.b16 %v995
  %v1229 = vunpack.c.h.b16 %v995
  %v1230 = vunpack.c.l.b16 %v996
  %v1231 = vunpack.c.h.b16 %v996
  %v1232 = vunpack.c.l.b16 %v997
  %v1233 = vunpack.c.h.b16 %v997
  %v1234 = vunpack.c.l.b16 %v998
  %v1235 = vunpack.c.h.b16 %v998
  %v1236 = vunpack.c.l.b16 %v999
  %v1237 = vunpack.c.h.b16 %v999
  %v1238 = vunpack.c.l.b16 %v1000
  %v1239 = vunpack.c.h.b16 %v1000
  %v1240 = vunpack.c.l.b16 %v1001
  %v1241 = vunpack.c.h.b16 %v1001
  %v1242 = vunpack.c.l.b16 %v1002
  %v1243 = vunpack.c.h.b16 %v1002
  %v1244 = vunpack.c.l.b16 %v1003
  %v1245 = vunpack.c.h.b16 %v1003
  %v1246 = vunpack.c.l.b16 %v1004
  %v1247 = vunpack.c.h.b16 %v1004
  %v1248 = vunpack.c.l.b16 %v1005
  %v1249 = vunpack.c.h.b16 %v1005
  %v1250 = vunpack.c.l.b16 %v1006
  %v1251 = vunpack.c.h.b16 %v1006
  %v1252 = vunpack.c.l.b16 %v1007
  %v1253 = vunpack.c.h.b16 %v1007
  %v1254 = vunpack.c.l.b16 %v1008
  %v1255 = vunpack.c.h.b16 %v1008
  %v1256 = vunpack.c.l.b16 %v1009
  %v1257 = vunpack.c.h.b16 %v1009
  %v1258 = vunpack.c.l.b16 %v1010
  %v1259 = vunpack.c.h.b16 %v1010
  %v1260 = vunpack.c.l.b16 %v1011
  %v1261 = vunpack.c.h.b16 %v1011
  %v1262 = vunpack.c.l.b16 %v1012
  %v1263 = vunpack.c.h.b16 %v1012
  %v1264 = vunpack.c.l.b16 %v1013
  %v1265 = vunpack.c.h.b16 %v1013
  %v1266 = vunpack.c.l.b16 %v1014
  %v1267 = vunpack.c.h.b16 %v1014
  %v1268 = vunpack.c.l.b16 %v1015
  %v1269 = vunpack.c.h.b16 %v1015
  %v1270 = vunpack.c.l.b16 %v1016
  %v1271 = vunpack.c.h.b16 %v1016
  %v1272 = vunpack.c.l.b16 %v1017
  %v1273 = vunpack.c.h.b16 %v1017
  %v1274 = vunpack.c.l.b16 %v1018
  %v1275 = vunpack.c.h.b16 %v1018
  %v1276 = vunpack.c.l.b16 %v1019
  %v1277 = vunpack.c.h.b16 %v1019
  %v1278 = vunpack.c.l.b16 %v1020
  %v1279 = vunpack.c.h.b16 %v1020
  %v1280 = vunpack.c.l.b16 %v1021
  %v1281 = vunpack.c.h.b16 %v1021
  %v1282 = vunpack.c.l.b16 %v1022
  %v1283 = vunpack.c.h.b16 %v1022
  %v1284 = vunpack.c.l.b16 %v1023
  %v1285 = vunpack.c.h.b16 %v1023
  %v1286 = vunpack.c.l.b16 %v1024
  %v1287 = vunpack.c.h.b16 %v1024
  %v1288 = vunpack.c.l.b16 %v1025
  %v1289 = vunpack.c.h.b16 %v1025
  %v1290 = vunpack.c.l.b16 %v1026
  %v1291 = vunpack.c.h.b16 %v1026
  %v1292 = vunpack.c.l.b16 %v1027
  %v1293 = vunpack.c.h.b16 %v1027
  %v1294 = vunpack.c.l.b16 %v1028
  %v1295 = vunpack.c.h.b16 %v1028
  %v1296 = vunpack.c.l.b16 %v1029
  %v1297 = vunpack.c.h.b16 %v1029
  %v1298 = vunpack.c.l.b16 %v1030
  %v1299 = vunpack.c.h.b16 %v1030
  %v1300 = vunpack.c.l.b16 %v1031
  %v1301 = vunpack.c.h.b16 %v1031
  %v1302 = vunpack.c.l.b16 %v1032
  %v1303 = vunpack.c.h.b16 %v1032
  %v1304 = vunpack.c.l.b16 %v1033
  %v1305 = vunpack.c.h.b16 %v1033
  %v1306 = vunpack.c.l.b16 %v1034
  %v1307 = vunpack.c.h.b16 %v1034
  %v1308 = vunpack.c.l.b16 %v1035
  %v1309 = vunpack.c.h.b16 %v1035
  %v1310 = vunpack.c.l.b16 %v1036
  %v1311 = vunpack.c.h.b16 %v1036
  %v1312 = vunpack.c.l.b16 %v1037
  %v1313 = vunpack.c.h.b16 %v1037
  %v1314 = vunpack.c.l.b16 %v1038
  %v1315 = vunpack.c.h.b16 %v1038
  %v1316 = vunpack.c.l.b16 %v1039
  %v1317 = vunpack.c.h.b16 %v1039
  %v1318 = vunpack.c.l.b16 %v1040
  %v1319 = vunpack.c.h.b16 %v1040
  %v1320 = vunpack.c.l.b16 %v1041
  %v1321 = vunpack.c.h.b16 %v1041
  %v1322 = vunpack.c.l.b16 %v1042
  %v1323 = vunpack.c.h.b16 %v1042
  %v1324 = vunpack.c.l.b16 %v1043
  %v1325 = vunpack.c.h.b16 %v1043
  %v1326 = vunpack.c.l.b16 %v1044
  %v1327 = vunpack.c.h.b16 %v1044
  %v1328 = vunpack.c.l.b16 %v1045
  %v1329 = vunpack.c.h.b16 %v1045
  %v1330 = vunpack.c.l.b16 %v1046
  %v1331 = vunpack.c.h.b16 %v1046
  %v1332 = vunpack.c.l.b16 %v1047
  %v1333 = vunpack.c.h.b16 %v1047
  %v1334 = vunpack.c.l.b16 %v1048
  %v1335 = vunpack.c.h.b16 %v1048
  %v1336 = vunpack.c.l.b16 %v1049
  %v1337 = vunpack.c.h.b16 %v1049
  %v1338 = vunpack.c.l.b16 %v1050
  %v1339 = vunpack.c.h.b16 %v1050
  %v1340 = vunpack.c.l.b16 %v1051
  %v1341 = vunpack.c.h.b16 %v1051
  %v1342 = vunpack.c.l.b16 %v1052
  %v1343 = vunpack.c.h.b16 %v1052
  %v1344 = vunpack.c.l.b16 %v1053
  %v1345 = vunpack.c.h.b16 %v1053
  %v1346 = vunpack.c.l.b16 %v1054
  %v1347 = vunpack.c.h.b16 %v1054
  %v1348 = vunpack.c.l.b16 %v1055
  %v1349 = vunpack.c.h.b16 %v1055
  %v1350 = vunpack.c.l.b16 %v1056
  %v1351 = vunpack.c.h.b16 %v1056
  %v1352 = vunpack.c.l.b16 %v1057
  %v1353 = vunpack.c.h.b16 %v1057
  %v1354 = vunpack.c.l.b16 %v1058
  %v1355 = vunpack.c.h.b16 %v1058
  %v1356 = vunpack.c.l.b16 %v1059
  %v1357 = vunpack.c.h.b16 %v1059
  %v1358 = vunpack.c.l.b16 %v1060
  %v1359 = vunpack.c.h.b16 %v1060
  %v1360 = vunpack.c.l.b16 %v1061
  %v1361 = vunpack.c.h.b16 %v1061
  %v1362 = vpack.c.b16 %v1168, %v1166
  %v1363 = vpack.c.b16 %v1169, %v1167
  %v1364 = vpack.c.b16 %v1172, %v1170
  %v1365 = vpack.c.b16 %v1173, %v1171
  %v1366 = vpack.c.b16 %v1176, %v1174
  %v1367 = vpack.c.b16 %v1177, %v1175
  %v1368 = vpack.c.b16 %v1180, %v1178
  %v1369 = vpack.c.b16 %v1181, %v1179
  %v1370 = vpack.c.b16 %v1184, %v1182
  %v1371 = vpack.c.b16 %v1185, %v1183
  %v1372 = vpack.c.b16 %v1188, %v1186
  %v1373 = vpack.c.b16 %v1189, %v1187
  %v1374 = vpack.c.b16 %v1192, %v1190
  %v1375 = vpack.c.b16 %v1193, %v1191
  %v1376 = vpack.c.b16 %v1196, %v1194
  %v1377 = vpack.c.b16 %v1197, %v1195
  %v1378 = vpack.c.b16 %v1200, %v1198
  %v1379 = vpack.c.b16 %v1201, %v1199
  %v1380 = vpack.c.b16 %v1204, %v1202
  %v1381 = vpack.c.b16 %v1205, %v1203
  %v1382 = vpack.c.b16 %v1208, %v1206
  %v1383 = vpack.c.b16 %v1209, %v1207
  %v1384 = vpack.c.b16 %v1212, %v1210
  %v1385 = vpack.c.b16 %v1213, %v1211
  %v1386 = vpack.c.b16 %v1216, %v1214
  %v1387 = vpack.c.b16 %v1217, %v1215
  %v1388 = vpack.c.b16 %v1220, %v1218
  %v1389 = vpack.c.b16 %v1221, %v1219
  %v1390 = vpack.c.b16 %v1224, %v1222
  %v1391 = vpack.c.b16 %v1225, %v1223
  %v1392 = vpack.c.b16 %v1228, %v1226
  %v1393 = vpack.c.b16 %v1229, %v1227
  %v1394 = vpack.c.b16 %v1232, %v1230
  %v1395 = vpack.c.b16 %v1233, %v1231
  %v1396 = vpack.c.b16 %v1236, %v1234
  %v1397 = vpack.c.b16 %v1237, %v1235
  %v1398 = vpack.c.b16 %v1240, %v1238
  %v1399 = vpack.c.b16 %v1241, %v1239
  %v1400 = vpack.c.b16 %v1244, %v1242
  %v1401 = vpack.c.b16 %v1245, %v1243
  %v1402 = vpack.c.b16 %v1248, %v1246
  %v1403 = vpack.c.b16 %v1249, %v1247
  %v1404 = vpack.c.b16 %v1252, %v1250
  %v1405 = vpack.c.b16 %v1253, %v1251
  %v1406 = vpack.c.b16 %v1256, %v1254
  %v1407 = vpack.c.b16 %v1257, %v1255
  %v1408 = vpack.c.b16 %v1260, %v1258
  %v1409 = vpack.c.b16 %v1261, %v1259
  %v1410 = vpack.c.b16 %v1264, %v1262
  %v1411 = vpack.c.b16 %v1265, %v1263
  %v1412 = vpack.c.b16 %v1268, %v1266
  %v1413 = vpack.c.b16 %v1269, %v1267
  %v1414 = vpack.c.b16 %v1272, %v1270
  %v1415 = vpack.c.b16 %v1273, %v1271
  %v1416 = vpack.c.b16 %v1276, %v1274
  %v1417 = vpack.c.b16 %v1277, %v1275
  %v1418 = vpack.c.b16 %v1280, %v1278
  %v1419 = vpack.c.b16 %v1281, %v1279
  %v1420 = vpack.c.b16 %v1284, %v1282
  %v1421 = vpack.c.b16 %v1285, %v1283
  %v1422 = vpack.c.b16 %v1288, %v1286
  %v1423 = vpack.c.b16 %v1289, %v1287
  %v1424 = vpack.c.b16 %v1292, %v1290
  %v1425 = vpack.c.b16 %v1293, %v1291
  %v1426 = vpack.c.b16 %v1296, %v1294
  %v1427 = vpack.c.b16 %v1297, %v1295
  %v1428 = vpack.c.b16 %v1300, %v1298
  %v1429 = vpack.c.b16 %v1301, %v1299
  %v1430 = vpack.c.b16 %v1304, %v1302
  %v1431 = vpack.c.b16 %v1305, %v1303
  %v1432 = vpack.c.b16 %v1308, %v1306
  %v1433 = vpack.c.b16 %v1309, %v1307
  %v1434 = vpack.c.b16 %v1312, %v1310
  %v1435 = vpack.c.b16 %v1313, %v1311
  %v1436 = vpack.c.b16 %v1316, %v1314
  %v1437 = vpack.c.b16 %v1317, %v1315
  %v1438 = vpack.c.b16 %v1320, %v1318
  %v1439 = vpack.c.b16 %v1321, %v1319
  %v1440 = vpack.c.b16 %v1324, %v1322
  %v1441 = vpack.c.b16 %v1325, %v1323
  %v1442 = vpack.c.b16 %v1328, %v1326
  %v1443 = vpack.c.b16 %v1329, %v1327
  %v1444 = vpack.c.b16 %v1332, %v1330
  %v1445 = vpack.c.b16 %v1333, %v1331
  %v1446 = vpack.c.b16 %v1336, %v1334
  %v1447 = vpack.c.b16 %v1337, %v1335
  %v1448 = vpack.c.b16 %v1340, %v1338
  %v1449 = vpack.c.b16 %v1341, %v1339
  %v1450 = vpack.c.b16 %v1344, %v1342
  %v1451 = vpack.c.b16 %v1345, %v1343
  %v1452 = vpack.c.b16 %v1348, %v1346
  %v1453 = vpack.c.b16 %v1349, %v1347
  %v1454 = vpack.c.b16 %v1352, %v1350
  %v1455 = vpack.c.b16 %v1353, %v1351
  %v1456 = vpack.c.b16 %v1356, %v1354
  %v1457 = vpack.c.b16 %v1357, %v1355
  %v1458 = vpack.c.b16 %v1360, %v1358
  %v1459 = vpack.c.b16 %v1361, %v1359
  %vm1558 = vcmask 130048
  %v1560 = vsel %vm1558, %v963, 0
  %1562 = vmatpush.bf16.msra.mxu0 %v1376
  %1563 = vmatpush.bf16.msra.mxu0 %v1374
  %1564 = vmatpush.bf16.msra.mxu0 %v1372
  %1565 = vmatpush.bf16.msra.mxu0 %v1370
  %1566 = vmatpush.bf16.msra.mxu0 %v1368
  %1567 = vmatpush.bf16.msra.mxu0 %v1366
  %1568 = vmatpush.bf16.msra.mxu0 %v1364
  %1569 = vmatpush.bf16.msra.mxu0 %v1362
  %1570 = vmatmul.bf16.gmra.mxu0 %v957
  %v1571 = vpop.f32.mrf.mxu0
  %v1572 = vadd.f32 %v1064, %v1571
  %v1573 = vpop.f32.mrf.mxu0
  %1574 = vdwg.mxu0
  %1575 = vmatpush.bf16.msra.mxu0 %v1392
  %1576 = vmatpush.bf16.msra.mxu0 %v1390
  %1577 = vmatpush.bf16.msra.mxu0 %v1388
  %1578 = vmatpush.bf16.msra.mxu0 %v1386
  %1579 = vmatpush.bf16.msra.mxu0 %v1384
  %1580 = vmatpush.bf16.msra.mxu0 %v1382
  %1581 = vmatpush.bf16.msra.mxu0 %v1380
  %1582 = vmatpush.bf16.msra.mxu0 %v1378
  %1583 = vmatmul.bf16.gmra.mxu0 %v958
  %v1584 = vpop.f32.mrf.mxu0
  %v1585 = vadd.f32 %v1572, %v1584
  %v1586 = vpop.f32.mrf.mxu0
  %1587 = vdwg.mxu0
  %1588 = vmatpush.bf16.msra.mxu0 %v1408
  %1589 = vmatpush.bf16.msra.mxu0 %v1406
  %1590 = vmatpush.bf16.msra.mxu0 %v1404
  %1591 = vmatpush.bf16.msra.mxu0 %v1402
  %1592 = vmatpush.bf16.msra.mxu0 %v1400
  %1593 = vmatpush.bf16.msra.mxu0 %v1398
  %1594 = vmatpush.bf16.msra.mxu0 %v1396
  %1595 = vmatpush.bf16.msra.mxu0 %v1394
  %1596 = vmatmul.bf16.gmra.mxu0 %v959
  %v1597 = vpop.f32.mrf.mxu0
  %v1598 = vadd.f32 %v1585, %v1597
  %v1599 = vpop.f32.mrf.mxu0
  %1600 = vdwg.mxu0
  %1601 = vmatpush.bf16.msra.mxu0 %v1424
  %1602 = vmatpush.bf16.msra.mxu0 %v1422
  %1603 = vmatpush.bf16.msra.mxu0 %v1420
  %1604 = vmatpush.bf16.msra.mxu0 %v1418
  %1605 = vmatpush.bf16.msra.mxu0 %v1416
  %1606 = vmatpush.bf16.msra.mxu0 %v1414
  %1607 = vmatpush.bf16.msra.mxu0 %v1412
  %1608 = vmatpush.bf16.msra.mxu0 %v1410
  %1609 = vmatmul.bf16.gmra.mxu0 %v960
  %v1610 = vpop.f32.mrf.mxu0
  %v1611 = vadd.f32 %v1598, %v1610
  %v1612 = vpop.f32.mrf.mxu0
  %1613 = vdwg.mxu0
  %1614 = vmatpush.bf16.msra.mxu0 %v1440
  %1615 = vmatpush.bf16.msra.mxu0 %v1438
  %1616 = vmatpush.bf16.msra.mxu0 %v1436
  %1617 = vmatpush.bf16.msra.mxu0 %v1434
  %1618 = vmatpush.bf16.msra.mxu0 %v1432
  %1619 = vmatpush.bf16.msra.mxu0 %v1430
  %1620 = vmatpush.bf16.msra.mxu0 %v1428
  %1621 = vmatpush.bf16.msra.mxu0 %v1426
  %1622 = vmatmul.bf16.gmra.mxu0 %v961
  %v1623 = vpop.f32.mrf.mxu0
  %v1624 = vadd.f32 %v1611, %v1623
  %v1625 = vpop.f32.mrf.mxu0
  %1626 = vdwg.mxu0
  %1627 = vmatpush.bf16.msra.mxu0 %v1456
  %1628 = vmatpush.bf16.msra.mxu0 %v1454
  %1629 = vmatpush.bf16.msra.mxu0 %v1452
  %1630 = vmatpush.bf16.msra.mxu0 %v1450
  %1631 = vmatpush.bf16.msra.mxu0 %v1448
  %1632 = vmatpush.bf16.msra.mxu0 %v1446
  %1633 = vmatpush.bf16.msra.mxu0 %v1444
  %1634 = vmatpush.bf16.msra.mxu0 %v1442
  %1635 = vmatmul.bf16.gmra.mxu0 %v962
  %v1636 = vpop.f32.mrf.mxu0
  %v1637 = vadd.f32 %v1624, %v1636
  %v1638 = vpop.f32.mrf.mxu0
  %1639 = vdwg.mxu0
  %1640 = vmatpush.bf16.msra.mxu0 0
  %1641 = vmatpush.bf16.msra.mxu0 0
  %1642 = vmatpush.bf16.msra.mxu0 0
  %1643 = vmatpush.bf16.msra.mxu0 0
  %1644 = vmatpush.bf16.msra.mxu0 0
  %1645 = vmatpush.bf16.msra.mxu0 0
  %1646 = vmatpush.bf16.msra.mxu0 0
  %1647 = vmatpush.bf16.msra.mxu0 %v1458
  %1648 = vmatmul.bf16.gmra.mxu0 %v1560
  %v1649 = vpop.f32.mrf.mxu0
  %v1650 = vadd.f32 %v1637, %v1649
  %v1651 = vpop.f32.mrf.mxu0
  %1652 = vdwg.mxu0
  %1653 = vmatpush.bf16.msra.mxu0 %v1377
  %1654 = vmatpush.bf16.msra.mxu0 %v1375
  %1655 = vmatpush.bf16.msra.mxu0 %v1373
  %1656 = vmatpush.bf16.msra.mxu0 %v1371
  %1657 = vmatpush.bf16.msra.mxu0 %v1369
  %1658 = vmatpush.bf16.msra.mxu0 %v1367
  %1659 = vmatpush.bf16.msra.mxu0 %v1365
  %1660 = vmatpush.bf16.msra.mxu0 %v1363
  %1661 = vmatmul.bf16.gmra.mxu0 %v957
  %v1662 = vpop.f32.mrf.mxu0
  %v1663 = vadd.f32 %v1065, %v1662
  %v1664 = vpop.f32.mrf.mxu0
  %1665 = vdwg.mxu0
  %1666 = vmatpush.bf16.msra.mxu0 %v1393
  %1667 = vmatpush.bf16.msra.mxu0 %v1391
  %1668 = vmatpush.bf16.msra.mxu0 %v1389
  %1669 = vmatpush.bf16.msra.mxu0 %v1387
  %1670 = vmatpush.bf16.msra.mxu0 %v1385
  %1671 = vmatpush.bf16.msra.mxu0 %v1383
  %1672 = vmatpush.bf16.msra.mxu0 %v1381
  %1673 = vmatpush.bf16.msra.mxu0 %v1379
  %1674 = vmatmul.bf16.gmra.mxu0 %v958
  %v1675 = vpop.f32.mrf.mxu0
  %v1676 = vadd.f32 %v1663, %v1675
  %v1677 = vpop.f32.mrf.mxu0
  %1678 = vdwg.mxu0
  %1679 = vmatpush.bf16.msra.mxu0 %v1409
  %1680 = vmatpush.bf16.msra.mxu0 %v1407
  %1681 = vmatpush.bf16.msra.mxu0 %v1405
  %1682 = vmatpush.bf16.msra.mxu0 %v1403
  %1683 = vmatpush.bf16.msra.mxu0 %v1401
  %1684 = vmatpush.bf16.msra.mxu0 %v1399
  %1685 = vmatpush.bf16.msra.mxu0 %v1397
  %1686 = vmatpush.bf16.msra.mxu0 %v1395
  %1687 = vmatmul.bf16.gmra.mxu0 %v959
  %v1688 = vpop.f32.mrf.mxu0
  %v1689 = vadd.f32 %v1676, %v1688
  %v1690 = vpop.f32.mrf.mxu0
  %1691 = vdwg.mxu0
  %1692 = vmatpush.bf16.msra.mxu0 %v1425
  %1693 = vmatpush.bf16.msra.mxu0 %v1423
  %1694 = vmatpush.bf16.msra.mxu0 %v1421
  %1695 = vmatpush.bf16.msra.mxu0 %v1419
  %1696 = vmatpush.bf16.msra.mxu0 %v1417
  %1697 = vmatpush.bf16.msra.mxu0 %v1415
  %1698 = vmatpush.bf16.msra.mxu0 %v1413
  %1699 = vmatpush.bf16.msra.mxu0 %v1411
  %1700 = vmatmul.bf16.gmra.mxu0 %v960
  %v1701 = vpop.f32.mrf.mxu0
  %v1702 = vadd.f32 %v1689, %v1701
  %v1703 = vpop.f32.mrf.mxu0
  %1704 = vdwg.mxu0
  %1705 = vmatpush.bf16.msra.mxu0 %v1441
  %1706 = vmatpush.bf16.msra.mxu0 %v1439
  %1707 = vmatpush.bf16.msra.mxu0 %v1437
  %1708 = vmatpush.bf16.msra.mxu0 %v1435
  %1709 = vmatpush.bf16.msra.mxu0 %v1433
  %1710 = vmatpush.bf16.msra.mxu0 %v1431
  %1711 = vmatpush.bf16.msra.mxu0 %v1429
  %1712 = vmatpush.bf16.msra.mxu0 %v1427
  %1713 = vmatmul.bf16.gmra.mxu0 %v961
  %v1714 = vpop.f32.mrf.mxu0
  %v1715 = vadd.f32 %v1702, %v1714
  %v1716 = vpop.f32.mrf.mxu0
  %1717 = vdwg.mxu0
  %1718 = vmatpush.bf16.msra.mxu0 %v1457
  %1719 = vmatpush.bf16.msra.mxu0 %v1455
  %1720 = vmatpush.bf16.msra.mxu0 %v1453
  %1721 = vmatpush.bf16.msra.mxu0 %v1451
  %1722 = vmatpush.bf16.msra.mxu0 %v1449
  %1723 = vmatpush.bf16.msra.mxu0 %v1447
  %1724 = vmatpush.bf16.msra.mxu0 %v1445
  %1725 = vmatpush.bf16.msra.mxu0 %v1443
  %1726 = vmatmul.bf16.gmra.mxu0 %v962
  %v1727 = vpop.f32.mrf.mxu0
  %v1728 = vadd.f32 %v1715, %v1727
  %v1729 = vpop.f32.mrf.mxu0
  %1730 = vdwg.mxu0
  %1731 = vmatpush.bf16.msra.mxu0 0
  %1732 = vmatpush.bf16.msra.mxu0 0
  %1733 = vmatpush.bf16.msra.mxu0 0
  %1734 = vmatpush.bf16.msra.mxu0 0
  %1735 = vmatpush.bf16.msra.mxu0 0
  %1736 = vmatpush.bf16.msra.mxu0 0
  %1737 = vmatpush.bf16.msra.mxu0 0
  %1738 = vmatpush.bf16.msra.mxu0 %v1459
  %1739 = vmatmul.bf16.gmra.mxu0 %v1560
  %v1740 = vpop.f32.mrf.mxu0
  %v1741 = vadd.f32 %v1728, %v1740
  %v1742 = vpop.f32.mrf.mxu0
  %1743 = vdwg.mxu0
  %v1744 = vmax.f32 %v1650, 0.0
  %v1745 = vmax.f32 %v1741, 0.0
  %v1746 = vpack.c.bf16 %v1744, %v1744
  %v1747 = vpack.c.bf16 %v1745, %v1745
  %v1748 = vld [vmem:[%s5] sm:$0xf]
  %v1749 = vld [vmem:[%s5 + $0x4] sm:$0xf]
  %v1750 = vld [vmem:[%s5 + $0x8] sm:$0xf]
  %v1751 = vld [vmem:[%s5 + $0xc] sm:$0xf]
  %v1752 = vld [vmem:[%s5 + $0x10] sm:$0xf]
  %v1753 = vld [vmem:[%s5 + $0x14] sm:$0xf]
  %v1754 = vld [vmem:[%s5 + $0x18] sm:$0xf]
  %v1755 = vld [vmem:[%s5 + $0x1c] sm:$0xf]
  %v1756 = vld [vmem:[%s5 + $0x20] sm:$0xf]
  %v1757 = vld [vmem:[%s5 + $0x24] sm:$0xf]
  %v1758 = vld [vmem:[%s5 + $0x28] sm:$0xf]
  %v1759 = vld [vmem:[%s5 + $0x2c] sm:$0xf]
  %v1760 = vld [vmem:[%s5 + $0x30] sm:$0xf]
  %v1761 = vld [vmem:[%s5 + $0x34] sm:$0xf]
  %v1762 = vld [vmem:[%s5 + $0x38] sm:$0xf]
  %v1763 = vld [vmem:[%s5 + $0x3c] sm:$0xf]
  %v1764 = vld [vmem:[%s5 + $0x40] sm:$0xf]
  %v1765 = vld [vmem:[%s5 + $0x44] sm:$0xf]
  %v1766 = vld [vmem:[%s5 + $0x48] sm:$0xf]
  %v1767 = vld [vmem:[%s5 + $0x4c] sm:$0xf]
  %v1768 = vld [vmem:[%s5 + $0x50] sm:$0xf]
  %v1769 = vld [vmem:[%s5 + $0x54] sm:$0xf]
  %v1770 = vld [vmem:[%s5 + $0x58] sm:$0xf]
  %v1771 = vld [vmem:[%s5 + $0x5c] sm:$0xf]
  %v1772 = vld [vmem:[%s5 + $0x60] sm:$0xf]
  %v1773 = vld [vmem:[%s6] sm:$0x1]
  %v1775 = vperm.slane %v1773, 0
  %v1802 = vunpack.c.l.b16 %v1748
  %v1803 = vunpack.c.l.b16 %v1749
  %v1804 = vunpack.c.l.b16 %v1750
  %v1805 = vunpack.c.l.b16 %v1751
  %v1806 = vunpack.c.l.b16 %v1752
  %v1807 = vunpack.c.l.b16 %v1753
  %v1808 = vunpack.c.l.b16 %v1754
  %v1809 = vunpack.c.l.b16 %v1755
  %v1810 = vunpack.c.l.b16 %v1756
  %v1811 = vunpack.c.l.b16 %v1757
  %v1812 = vunpack.c.l.b16 %v1758
  %v1813 = vunpack.c.l.b16 %v1759
  %v1814 = vunpack.c.l.b16 %v1760
  %v1815 = vunpack.c.l.b16 %v1761
  %v1816 = vunpack.c.l.b16 %v1762
  %v1817 = vunpack.c.l.b16 %v1763
  %v1818 = vunpack.c.l.b16 %v1764
  %v1819 = vunpack.c.l.b16 %v1765
  %v1820 = vunpack.c.l.b16 %v1766
  %v1821 = vunpack.c.l.b16 %v1767
  %v1822 = vunpack.c.l.b16 %v1768
  %v1823 = vunpack.c.l.b16 %v1769
  %v1824 = vunpack.c.l.b16 %v1770
  %v1825 = vunpack.c.l.b16 %v1771
  %v1826 = vunpack.c.l.b16 %v1772
  %v1827 = vpack.c.b16 %v1803, %v1802
  %v1828 = vpack.c.b16 %v1805, %v1804
  %v1829 = vpack.c.b16 %v1807, %v1806
  %v1830 = vpack.c.b16 %v1809, %v1808
  %v1831 = vpack.c.b16 %v1811, %v1810
  %v1832 = vpack.c.b16 %v1813, %v1812
  %v1833 = vpack.c.b16 %v1815, %v1814
  %v1834 = vpack.c.b16 %v1817, %v1816
  %v1835 = vpack.c.b16 %v1819, %v1818
  %v1836 = vpack.c.b16 %v1821, %v1820
  %v1837 = vpack.c.b16 %v1823, %v1822
  %v1838 = vpack.c.b16 %v1825, %v1824
  %v1839 = vpack.c.b16 %v1826, %v1826
  %vm1852 = vcmask 588800
  %v1854 = vsel %vm1852, %v1747, 0
  %vm1856 = vcmask 1043456
  %v1858 = vsel %vm1856, %v1839, 0
  %1860 = vmatpush.bf16.msra.mxu0 %v1834
  %1861 = vmatpush.bf16.msra.mxu0 %v1833
  %1862 = vmatpush.bf16.msra.mxu0 %v1832
  %1863 = vmatpush.bf16.msra.mxu0 %v1831
  %1864 = vmatpush.bf16.msra.mxu0 %v1830
  %1865 = vmatpush.bf16.msra.mxu0 %v1829
  %1866 = vmatpush.bf16.msra.mxu0 %v1828
  %1867 = vmatpush.bf16.msra.mxu0 %v1827
  %1868 = vmatmul.bf16.gmra.mxu0 %v1746
  %v1869 = vpop.f32.mrf.mxu0
  %v1870 = vadd.f32 %v1775, %v1869
  %v1871 = vpop.f32.mrf.mxu0
  %1872 = vdwg.mxu0
  %1873 = vmatpush.bf16.msra.mxu0 0
  %1874 = vmatpush.bf16.msra.mxu0 0
  %1875 = vmatpush.bf16.msra.mxu0 0
  %1876 = vmatpush.bf16.msra.mxu0 %v1858
  %1877 = vmatpush.bf16.msra.mxu0 %v1838
  %1878 = vmatpush.bf16.msra.mxu0 %v1837
  %1879 = vmatpush.bf16.msra.mxu0 %v1836
  %1880 = vmatpush.bf16.msra.mxu0 %v1835
  %1881 = vmatmul.bf16.gmra.mxu0 %v1854
  %v1882 = vpop.f32.mrf.mxu0
  %v1883 = vadd.f32 %v1870, %v1882
  %v1884 = vpop.f32.mrf.mxu0
  %1885 = vdwg.mxu0
  %v1886 = vmax.f32 %v1883, 0.0
  %v1887 = vpack.c.bf16 %v1886, %v1886
  %v1888 = vld [vmem:[%s7] sm:$0xf]
  %v1889 = vld [vmem:[%s7 + $0x4] sm:$0xf]
  %v1890 = vld [vmem:[%s7 + $0x8] sm:$0xf]
  %v1891 = vld [vmem:[%s7 + $0xc] sm:$0xf]
  %v1892 = vld [vmem:[%s7 + $0x10] sm:$0xf]
  %v1893 = vld [vmem:[%s7 + $0x14] sm:$0xf]
  %v1894 = vld [vmem:[%s7 + $0x18] sm:$0xf]
  %v1895 = vld [vmem:[%s7 + $0x1c] sm:$0xf]
  %v1896 = vld [vmem:[%s7 + $0x20] sm:$0xf]
  %v1897 = vld [vmem:[%s7 + $0x24] sm:$0xf]
  %v1898 = vld [vmem:[%s7 + $0x28] sm:$0xf]
  %v1899 = vld [vmem:[%s7 + $0x2c] sm:$0xf]
  %v1900 = vld [vmem:[%s7 + $0x30] sm:$0xf]
  %v1901 = vld [vmem:[%s7 + $0x34] sm:$0xf]
  %v1902 = vld [vmem:[%s7 + $0x38] sm:$0xf]
  %v1903 = vld [vmem:[%s7 + $0x3c] sm:$0xf]
  %v1904 = vld [vmem:[%s8] sm:$0x1]
  %v1906 = vperm.slane %v1904, 0
  %v1924 = vunpack.c.l.b16 %v1888
  %v1925 = vunpack.c.l.b16 %v1889
  %v1926 = vunpack.c.l.b16 %v1890
  %v1927 = vunpack.c.l.b16 %v1891
  %v1928 = vunpack.c.l.b16 %v1892
  %v1929 = vunpack.c.l.b16 %v1893
  %v1930 = vunpack.c.l.b16 %v1894
  %v1931 = vunpack.c.l.b16 %v1895
  %v1932 = vunpack.c.l.b16 %v1896
  %v1933 = vunpack.c.l.b16 %v1897
  %v1934 = vunpack.c.l.b16 %v1898
  %v1935 = vunpack.c.l.b16 %v1899
  %v1936 = vunpack.c.l.b16 %v1900
  %v1937 = vunpack.c.l.b16 %v1901
  %v1938 = vunpack.c.l.b16 %v1902
  %v1939 = vunpack.c.l.b16 %v1903
  %v1940 = vpack.c.b16 %v1925, %v1924
  %v1941 = vpack.c.b16 %v1927, %v1926
  %v1942 = vpack.c.b16 %v1929, %v1928
  %v1943 = vpack.c.b16 %v1931, %v1930
  %v1944 = vpack.c.b16 %v1933, %v1932
  %v1945 = vpack.c.b16 %v1935, %v1934
  %v1946 = vpack.c.b16 %v1937, %v1936
  %v1947 = vpack.c.b16 %v1939, %v1938
  %1956 = vmatpush.bf16.msra.mxu0 %v1947
  %1957 = vmatpush.bf16.msra.mxu0 %v1946
  %1958 = vmatpush.bf16.msra.mxu0 %v1945
  %1959 = vmatpush.bf16.msra.mxu0 %v1944
  %1960 = vmatpush.bf16.msra.mxu0 %v1943
  %1961 = vmatpush.bf16.msra.mxu0 %v1942
  %1962 = vmatpush.bf16.msra.mxu0 %v1941
  %1963 = vmatpush.bf16.msra.mxu0 %v1940
  %1964 = vmatmul.bf16.gmra.mxu0 %v1887
  %v1965 = vpop.f32.mrf.mxu0
  %v1966 = vadd.f32 %v1906, %v1965
  %v1967 = vpop.f32.mrf.mxu0
  %1968 = vdwg.mxu0
  %v1969 = vmax.f32 %v1966, 0.0
  %v1970 = vpack.c.bf16 %v1969, %v1969
  %v1971 = vld [vmem:[%s9] sm:$0xf]
  %v1972 = vld [vmem:[%s9 + $0x4] sm:$0xf]
  %v1973 = vld [vmem:[%s9 + $0x8] sm:$0xf]
  %v1974 = vld [vmem:[%s9 + $0xc] sm:$0xf]
  %v1975 = vld [vmem:[%s9 + $0x10] sm:$0xf]
  %v1976 = vld [vmem:[%s9 + $0x14] sm:$0xf]
  %v1977 = vld [vmem:[%s9 + $0x18] sm:$0xf]
  %v1978 = vld [vmem:[%s9 + $0x1c] sm:$0xf]
  %v1979 = vld [vmem:[%s9 + $0x20] sm:$0xf]
  %v1980 = vld [vmem:[%s9 + $0x24] sm:$0xf]
  %v1981 = vld [vmem:[%s9 + $0x28] sm:$0xf]
  %v1982 = vld [vmem:[%s9 + $0x2c] sm:$0xf]
  %v1983 = vld [vmem:[%s9 + $0x30] sm:$0xf]
  %v1984 = vld [vmem:[%s9 + $0x34] sm:$0xf]
  %v1985 = vld [vmem:[%s9 + $0x38] sm:$0xf]
  %v1986 = vld [vmem:[%s9 + $0x3c] sm:$0xf]
  %v1987 = vld [vmem:[%s10] sm:$0x1]
  %v1989 = vperm.slane %v1987, 0
  %v2007 = vunpack.c.l.b16 %v1971
  %v2008 = vunpack.c.l.b16 %v1972
  %v2009 = vunpack.c.l.b16 %v1973
  %v2010 = vunpack.c.l.b16 %v1974
  %v2011 = vunpack.c.l.b16 %v1975
  %v2012 = vunpack.c.l.b16 %v1976
  %v2013 = vunpack.c.l.b16 %v1977
  %v2014 = vunpack.c.l.b16 %v1978
  %v2015 = vunpack.c.l.b16 %v1979
  %v2016 = vunpack.c.l.b16 %v1980
  %v2017 = vunpack.c.l.b16 %v1981
  %v2018 = vunpack.c.l.b16 %v1982
  %v2019 = vunpack.c.l.b16 %v1983
  %v2020 = vunpack.c.l.b16 %v1984
  %v2021 = vunpack.c.l.b16 %v1985
  %v2022 = vunpack.c.l.b16 %v1986
  %v2023 = vpack.c.b16 %v2008, %v2007
  %v2024 = vpack.c.b16 %v2010, %v2009
  %v2025 = vpack.c.b16 %v2012, %v2011
  %v2026 = vpack.c.b16 %v2014, %v2013
  %v2027 = vpack.c.b16 %v2016, %v2015
  %v2028 = vpack.c.b16 %v2018, %v2017
  %v2029 = vpack.c.b16 %v2020, %v2019
  %v2030 = vpack.c.b16 %v2022, %v2021
  %2039 = vmatpush.bf16.msra.mxu0 %v2030
  %2040 = vmatpush.bf16.msra.mxu0 %v2029
  %2041 = vmatpush.bf16.msra.mxu0 %v2028
  %2042 = vmatpush.bf16.msra.mxu0 %v2027
  %2043 = vmatpush.bf16.msra.mxu0 %v2026
  %2044 = vmatpush.bf16.msra.mxu0 %v2025
  %2045 = vmatpush.bf16.msra.mxu0 %v2024
  %2046 = vmatpush.bf16.msra.mxu0 %v2023
  %2047 = vmatmul.bf16.gmra.mxu0 %v1970
  %v2048 = vpop.f32.mrf.mxu0
  %v2049 = vadd.f32 %v1989, %v2048
  %v2050 = vpop.f32.mrf.mxu0
  %2051 = vdwg.mxu0
  %v2052 = vand.u32 2147483647, %v2049
  %v2053 = vsub.f32 0.0, %v2052
  %v2054 = vmul.f32 %v2053, 1.442695
  %v2055 = vpow.pop %v2054
  %v2056 = vadd.f32 %v2055, 1.0
  %v2057 = vrcp.pop %v2056
  %vm2058 = vcmp.ge.f32.partialorder %v2049, 0.0
  %v2059 = vsub.f32 1.0, %v2057
  %v2060 = vsel %vm2058, %v2057, %v2059
  %2061 = vst [vmem:[%s11] sm:$0x3] %v2060
  // Predicated region
  $region46: #{lenet_forward.1} parent=0 // pred_check
    _
  $region47: #{lenet_forward.1} parent=0 // pred_check_branch
    %2063 = sbr.rel (0) target = $region49
  $region48: #{lenet_forward.1} parent=0 // pred_region
    _
  $region49: #{lenet_forward.1} parent=0 // pred_fallthru
    _
  // Predicated region
  $region50: #{lenet_forward.1} parent=0 // pred_check
    _
  $region51: #{lenet_forward.1} parent=0 // pred_check_branch
    %2065 = sbr.rel (0) target = $region53
  $region52: #{lenet_forward.1} parent=0 // pred_region
    _
  $region53: #{lenet_forward.1} parent=0 // pred_fallthru
    _

</llo_original>
